<compile_context>
chip_gen: v7x
topology: tpu7x:2x2x1
jax: 0.10.0
libtpu: 0.0.40
codegen_flags: <defaults>
</compile_context>

<pallas_src>
import functools

import jax
import jax.numpy as jnp
from jax import lax
from jax.experimental import pallas as pl
from jax.experimental.pallas import tpu as pltpu  # noqa: F401  (TPU backend)


# --------------------------------------------------------------------------
# Single fused Pallas kernel: all layers + final lin_cat accumulation.
# --------------------------------------------------------------------------
def _graph_transformer_kernel(
    act_ref,    # [2, N, hid]         plane 0 = x, plane 1 = deg (broadcast)
    add_ref,    # [L, N, 4*hid]       [peq*scale | pek | bv | bo] per layer
    wqkv_ref,   # [L, hid, 3*hid]     [Wq*scale | Wk | Wv]
    wo_ref,     # [L, hid, hid]
    wcat_ref,   # [L+1, hid, P]       lin_cat weight, cols zero-padded to P
    bcat_ref,   # [1, P]
    o_ref,      # [N, P]
    *, num_layers, heads, hid):
    dh = hid // heads

    x = act_ref[0]          # [N, hid]
    deg = act_ref[1]        # [N, hid]  (degree scale, pre-broadcast)

    # lin_cat contribution of the layer-0 input (output lanes padded to P).
    acc = jnp.dot(x, wcat_ref[0], preferred_element_type=jnp.float32)   # [N, P]

    h_cur = x
    for l in range(num_layers):
        add_l = add_ref[l]                                   # [N, 4*hid]

        # Fused Q|K|V projection: one MXU push; PE/bias terms precomputed.
        qkv = jnp.dot(h_cur, wqkv_ref[l],
                      preferred_element_type=jnp.float32)    # [N, 3*hid]
        qkv = qkv + add_l[:, : 3 * hid]
        bo_b = add_l[:, 3 * hid:]                            # [N, hid]

        # Per-head attention (static unroll). Head outputs are assembled into
        # one [N, hid] buffer so the output projection is a single matmul.
        head_outs = []
        for hh in range(heads):
            q_h = qkv[:, hh * dh: (hh + 1) * dh]
            k_h = qkv[:, hid + hh * dh: hid + (hh + 1) * dh]
            v_h = qkv[:, 2 * hid + hh * dh: 2 * hid + (hh + 1) * dh]
            # q_h @ k_h^T without an explicit transpose (contract last dims).
            s = lax.dot_general(q_h, k_h, (((1,), (1,)), ((), ())),
                                preferred_element_type=jnp.float32)   # [N, N]
            s = s - jnp.max(s, axis=-1, keepdims=True)
            p = jnp.exp(s)
            p = p * pl.reciprocal(jnp.sum(p, axis=-1, keepdims=True),
                                  approx=True)
            head_outs.append(jnp.dot(p, v_h,
                                     preferred_element_type=jnp.float32))

        # Degree scaling applied once per layer (commutes with Wo matmul).
        h_att = jnp.concatenate(head_outs, axis=-1) * deg     # [N, hid]

        layer_out = jnp.dot(h_att, wo_ref[l],
                            preferred_element_type=jnp.float32)
        h_cur = jnp.maximum(layer_out + bo_b + h_cur, 0.0)    # bias+residual+relu

        # Accumulate this layer's contribution to lin_cat.
        acc = acc + jnp.dot(h_cur, wcat_ref[l + 1],
                            preferred_element_type=jnp.float32)

    out = jnp.maximum(acc + bcat_ref[...], 0.0)               # [N, P], lane-dense
    o_ref[...] = out.astype(o_ref.dtype)


# --------------------------------------------------------------------------
# Model glue: parameter packing (host/XLA side) + one pallas_call forward.
# --------------------------------------------------------------------------
def init_linear(key, fan_in, fan_out):
    """nn.Linear-style uniform(+-1/sqrt(fan_in)) init."""
    kw, kb = jax.random.split(key)
    bound = 1.0 / (fan_in ** 0.5)
    w = jax.random.uniform(kw, (fan_in, fan_out), jnp.float32, -bound, bound)
    b = jax.random.uniform(kb, (fan_out,), jnp.float32, -bound, bound)
    return w, b


def init_graph_transformer(key, hid_dim, num_layers):
    keys = jax.random.split(key, num_layers * 4 + 1)
    layers = []
    for i in range(num_layers):
        wq, bq = init_linear(keys[4 * i + 0], hid_dim, hid_dim)
        wk, bk = init_linear(keys[4 * i + 1], hid_dim, hid_dim)
        wv, bv = init_linear(keys[4 * i + 2], hid_dim, hid_dim)
        wo, bo = init_linear(keys[4 * i + 3], hid_dim, hid_dim)
        layers.append(dict(wq=wq, bq=bq, wk=wk, bk=bk, wv=wv, bv=bv, wo=wo, bo=bo))
    w_cat, b_cat = init_linear(keys[-1], (num_layers + 1) * hid_dim, hid_dim)
    return dict(layers=layers, w_cat=w_cat, b_cat=b_cat)


def graph_transformer_forward(params, x, pe_Q, pe_K, deg, heads, dropout_p):
    # dropout_p == 0.0 -> identity (see TODO at top of file).
    del dropout_p
    layers = params["layers"]
    num_layers = len(layers)
    n, hid = x.shape
    dh = hid // heads
    scale = 1.0 / (dh ** 0.5)

    # ---- pack operands into a few slabs (cuts DMA-prologue count) ----------
    # Activation slab: x and deg (broadcast to [N, hid] once, host-side).
    act = jnp.stack([x, jnp.broadcast_to(deg, (n, hid))])          # [2, N, hid]

    # Per-layer additive slab + fused weights. The attention scale and the
    # Q-projection bias/PE term are folded so the kernel does one matmul and
    # one 128-lane add per layer for all of Q/K/V.
    adds, wqkvs, wos = [], [], []
    for lyr in layers:
        peq = (pe_Q @ lyr["wq"] + lyr["bq"]) * scale               # [N, hid]
        pek = pe_K @ lyr["wk"] + lyr["bk"]                         # [N, hid]
        bv_b = jnp.broadcast_to(lyr["bv"], (n, hid))
        bo_b = jnp.broadcast_to(lyr["bo"], (n, hid))
        adds.append(jnp.concatenate([peq, pek, bv_b, bo_b], axis=-1))
        wqkvs.append(jnp.concatenate([lyr["wq"] * scale, lyr["wk"], lyr["wv"]],
                                     axis=-1))
        wos.append(lyr["wo"])
    add = jnp.stack(adds)                                          # [L, N, 4*hid]
    wqkv = jnp.stack(wqkvs)                                        # [L, hid, 3*hid]
    wo = jnp.stack(wos)                                            # [L, hid, hid]

    # lin_cat weights: output columns zero-padded to a lane-dense multiple of
    # 128 so the single HBM store of the result is unmasked.
    p_out = ((hid + 127) // 128) * 128
    pad = p_out - hid
    wcat = params["w_cat"].reshape(num_layers + 1, hid, hid)
    bcat = params["b_cat"]
    if pad:
        wcat = jnp.pad(wcat, ((0, 0), (0, 0), (0, pad)))
        bcat = jnp.pad(bcat, ((0, pad),))
    bcat = bcat.reshape(1, p_out)

    kernel = functools.partial(_graph_transformer_kernel,
                               num_layers=num_layers, heads=heads, hid=hid)

    # Gridless call: single invocation, everything resident in VMEM (<1 MiB).
    out_p = pl.pallas_call(
        kernel,
        out_shape=jax.ShapeDtypeStruct((n, p_out), jnp.float32),
    )(act, add, wqkv, wo, wcat, bcat)

    return out_p[:, :hid]


# --------------------------------------------------------------------------
if __name__ == "__main__":
    # Small config consistent with the module's constructor.
    N = 16              # number of graph nodes
    IN_DIM = 32
    HID_DIM = 32
    NUM_EDGE_TYPES = 3  # unused (see TODO)
    HEADS = 4
    NUM_LAYERS = 2
    DROPOUT = 0.0

    key = jax.random.PRNGKey(0)
    k_x, k_pq, k_pk, k_deg, k_params = jax.random.split(key, 5)

    x = jax.random.normal(k_x, (N, HID_DIM), jnp.float32)
    pe_Q = jax.random.normal(k_pq, (N, HID_DIM), jnp.float32)
    pe_K = jax.random.normal(k_pk, (N, HID_DIM), jnp.float32)
    # degree-based scale, kept positive and bounded
    raw_deg = jax.random.randint(k_deg, (N, 1), 1, 8).astype(jnp.float32)
    deg = 1.0 / jnp.sqrt(raw_deg)

    params = init_graph_transformer(k_params, HID_DIM, NUM_LAYERS)

    fwd = jax.jit(functools.partial(graph_transformer_forward,
                                    heads=HEADS, dropout_p=DROPOUT))
    out = fwd(params, x, pe_Q, pe_K, deg)
    out = jax.block_until_ready(out)

    assert out.shape == (N, HID_DIM), out.shape
    assert bool(jnp.all(jnp.isfinite(out)))
    print("KERNEL_OK")
</pallas_src>

<mosaic_0001>
module attributes {stable_mosaic.version = 11 : i64} {
  func.func @_graph_transformer_kernel(%arg0: memref<2x16x32xf32, #tpu.memory_space<vmem>>, %arg1: memref<2x16x128xf32, #tpu.memory_space<vmem>>, %arg2: memref<2x32x96xf32, #tpu.memory_space<vmem>>, %arg3: memref<2x32x32xf32, #tpu.memory_space<vmem>>, %arg4: memref<3x32x128xf32, #tpu.memory_space<vmem>>, %arg5: memref<1x128xf32, #tpu.memory_space<vmem>>, %arg6: memref<16x128xf32, #tpu.memory_space<vmem>>) attributes {dimension_semantics = [], scalar_prefetch = 0 : i64, scratch_operands = 0 : i64, tpu.core_type = #tpu.core_type<tc>} {
    %c0 = arith.constant 0 : index
    %c0_0 = arith.constant 0 : index
    %c0_1 = arith.constant 0 : index
    %0 = vector.load %arg0[%c0, %c0_0, %c0_1] : memref<2x16x32xf32, #tpu.memory_space<vmem>>, vector<1x16x32xf32>
    %1 = vector.shape_cast %0 : vector<1x16x32xf32> to vector<16x32xf32>
    %c1 = arith.constant 1 : index
    %c0_2 = arith.constant 0 : index
    %c0_3 = arith.constant 0 : index
    %2 = vector.load %arg0[%c1, %c0_2, %c0_3] : memref<2x16x32xf32, #tpu.memory_space<vmem>>, vector<1x16x32xf32>
    %3 = vector.shape_cast %2 : vector<1x16x32xf32> to vector<16x32xf32>
    %c0_4 = arith.constant 0 : index
    %c0_5 = arith.constant 0 : index
    %c0_6 = arith.constant 0 : index
    %4 = vector.load %arg4[%c0_4, %c0_5, %c0_6] : memref<3x32x128xf32, #tpu.memory_space<vmem>>, vector<1x32x128xf32>
    %5 = vector.shape_cast %4 : vector<1x32x128xf32> to vector<32x128xf32>
    %cst = arith.constant dense<0.000000e+00> : vector<16x128xf32>
    %6 = tpu.matmul %1, %5, %cst {dimension_numbers = #tpu.dot_dimension_numbers<[1], [0], [0], [1], [0, 0, 1, 1], [], []>} : vector<16x32xf32>, vector<32x128xf32>, vector<16x128xf32> -> vector<16x128xf32>
    %c0_7 = arith.constant 0 : index
    %c0_8 = arith.constant 0 : index
    %c0_9 = arith.constant 0 : index
    %7 = vector.load %arg1[%c0_7, %c0_8, %c0_9] : memref<2x16x128xf32, #tpu.memory_space<vmem>>, vector<1x16x128xf32>
    %8 = vector.shape_cast %7 : vector<1x16x128xf32> to vector<16x128xf32>
    %c0_10 = arith.constant 0 : index
    %c0_11 = arith.constant 0 : index
    %c0_12 = arith.constant 0 : index
    %9 = vector.load %arg2[%c0_10, %c0_11, %c0_12] : memref<2x32x96xf32, #tpu.memory_space<vmem>>, vector<1x32x96xf32>
    %10 = vector.shape_cast %9 : vector<1x32x96xf32> to vector<32x96xf32>
    %cst_13 = arith.constant dense<0.000000e+00> : vector<16x96xf32>
    %11 = tpu.matmul %1, %10, %cst_13 {dimension_numbers = #tpu.dot_dimension_numbers<[1], [0], [0], [1], [0, 0, 1, 1], [], []>} : vector<16x32xf32>, vector<32x96xf32>, vector<16x96xf32> -> vector<16x96xf32>
    %12 = vector.extract_strided_slice %8 {offsets = [0, 0], sizes = [16, 96], strides = [1, 1]} : vector<16x128xf32> to vector<16x96xf32>
    %13 = arith.addf %11, %12 : vector<16x96xf32>
    %14 = vector.extract_strided_slice %8 {offsets = [0, 96], sizes = [16, 32], strides = [1, 1]} : vector<16x128xf32> to vector<16x32xf32>
    %15 = vector.extract_strided_slice %13 {offsets = [0, 0], sizes = [16, 8], strides = [1, 1]} : vector<16x96xf32> to vector<16x8xf32>
    %16 = vector.extract_strided_slice %13 {offsets = [0, 32], sizes = [16, 8], strides = [1, 1]} : vector<16x96xf32> to vector<16x8xf32>
    %17 = vector.extract_strided_slice %13 {offsets = [0, 64], sizes = [16, 8], strides = [1, 1]} : vector<16x96xf32> to vector<16x8xf32>
    %cst_14 = arith.constant dense<0.000000e+00> : vector<16x16xf32>
    %18 = tpu.matmul %15, %16, %cst_14 {dimension_numbers = #tpu.dot_dimension_numbers<[1], [1], [0], [0], [0, 0, 1, 0], [], []>} : vector<16x8xf32>, vector<16x8xf32>, vector<16x16xf32> -> vector<16x16xf32>
    %cst_15 = arith.constant dense<0xFF800000> : vector<16xf32>
    %19 = vector.multi_reduction <maximumf>, %18, %cst_15 [1] : vector<16x16xf32> to vector<16xf32>
    %20 = vector.shape_cast %19 : vector<16xf32> to vector<16x1xf32>
    %21 = vector.broadcast %20 : vector<16x1xf32> to vector<16x16xf32>
    %22 = arith.subf %18, %21 : vector<16x16xf32>
    %23 = math.exp %22 : vector<16x16xf32>
    %cst_16 = arith.constant dense<0.000000e+00> : vector<16xf32>
    %24 = vector.multi_reduction <add>, %23, %cst_16 [1] : vector<16x16xf32> to vector<16xf32>
    %25 = vector.shape_cast %24 : vector<16xf32> to vector<16x1xf32>
    %26 = tpu.reciprocal %25 {approx = true} : vector<16x1xf32> -> vector<16x1xf32>
    %27 = vector.broadcast %26 : vector<16x1xf32> to vector<16x16xf32>
    %28 = arith.mulf %23, %27 : vector<16x16xf32>
    %cst_17 = arith.constant dense<0.000000e+00> : vector<16x8xf32>
    %29 = tpu.matmul %28, %17, %cst_17 {dimension_numbers = #tpu.dot_dimension_numbers<[1], [0], [0], [1], [0, 0, 1, 1], [], []>} : vector<16x16xf32>, vector<16x8xf32>, vector<16x8xf32> -> vector<16x8xf32>
    %30 = vector.extract_strided_slice %13 {offsets = [0, 8], sizes = [16, 8], strides = [1, 1]} : vector<16x96xf32> to vector<16x8xf32>
    %31 = vector.extract_strided_slice %13 {offsets = [0, 40], sizes = [16, 8], strides = [1, 1]} : vector<16x96xf32> to vector<16x8xf32>
    %32 = vector.extract_strided_slice %13 {offsets = [0, 72], sizes = [16, 8], strides = [1, 1]} : vector<16x96xf32> to vector<16x8xf32>
    %cst_18 = arith.constant dense<0.000000e+00> : vector<16x16xf32>
    %33 = tpu.matmul %30, %31, %cst_18 {dimension_numbers = #tpu.dot_dimension_numbers<[1], [1], [0], [0], [0, 0, 1, 0], [], []>} : vector<16x8xf32>, vector<16x8xf32>, vector<16x16xf32> -> vector<16x16xf32>
    %cst_19 = arith.constant dense<0xFF800000> : vector<16xf32>
    %34 = vector.multi_reduction <maximumf>, %33, %cst_19 [1] : vector<16x16xf32> to vector<16xf32>
    %35 = vector.shape_cast %34 : vector<16xf32> to vector<16x1xf32>
    %36 = vector.broadcast %35 : vector<16x1xf32> to vector<16x16xf32>
    %37 = arith.subf %33, %36 : vector<16x16xf32>
    %38 = math.exp %37 : vector<16x16xf32>
    %cst_20 = arith.constant dense<0.000000e+00> : vector<16xf32>
    %39 = vector.multi_reduction <add>, %38, %cst_20 [1] : vector<16x16xf32> to vector<16xf32>
    %40 = vector.shape_cast %39 : vector<16xf32> to vector<16x1xf32>
    %41 = tpu.reciprocal %40 {approx = true} : vector<16x1xf32> -> vector<16x1xf32>
    %42 = vector.broadcast %41 : vector<16x1xf32> to vector<16x16xf32>
    %43 = arith.mulf %38, %42 : vector<16x16xf32>
    %cst_21 = arith.constant dense<0.000000e+00> : vector<16x8xf32>
    %44 = tpu.matmul %43, %32, %cst_21 {dimension_numbers = #tpu.dot_dimension_numbers<[1], [0], [0], [1], [0, 0, 1, 1], [], []>} : vector<16x16xf32>, vector<16x8xf32>, vector<16x8xf32> -> vector<16x8xf32>
    %45 = vector.extract_strided_slice %13 {offsets = [0, 16], sizes = [16, 8], strides = [1, 1]} : vector<16x96xf32> to vector<16x8xf32>
    %46 = vector.extract_strided_slice %13 {offsets = [0, 48], sizes = [16, 8], strides = [1, 1]} : vector<16x96xf32> to vector<16x8xf32>
    %47 = vector.extract_strided_slice %13 {offsets = [0, 80], sizes = [16, 8], strides = [1, 1]} : vector<16x96xf32> to vector<16x8xf32>
    %cst_22 = arith.constant dense<0.000000e+00> : vector<16x16xf32>
    %48 = tpu.matmul %45, %46, %cst_22 {dimension_numbers = #tpu.dot_dimension_numbers<[1], [1], [0], [0], [0, 0, 1, 0], [], []>} : vector<16x8xf32>, vector<16x8xf32>, vector<16x16xf32> -> vector<16x16xf32>
    %cst_23 = arith.constant dense<0xFF800000> : vector<16xf32>
    %49 = vector.multi_reduction <maximumf>, %48, %cst_23 [1] : vector<16x16xf32> to vector<16xf32>
    %50 = vector.shape_cast %49 : vector<16xf32> to vector<16x1xf32>
    %51 = vector.broadcast %50 : vector<16x1xf32> to vector<16x16xf32>
    %52 = arith.subf %48, %51 : vector<16x16xf32>
    %53 = math.exp %52 : vector<16x16xf32>
    %cst_24 = arith.constant dense<0.000000e+00> : vector<16xf32>
    %54 = vector.multi_reduction <add>, %53, %cst_24 [1] : vector<16x16xf32> to vector<16xf32>
    %55 = vector.shape_cast %54 : vector<16xf32> to vector<16x1xf32>
    %56 = tpu.reciprocal %55 {approx = true} : vector<16x1xf32> -> vector<16x1xf32>
    %57 = vector.broadcast %56 : vector<16x1xf32> to vector<16x16xf32>
    %58 = arith.mulf %53, %57 : vector<16x16xf32>
    %cst_25 = arith.constant dense<0.000000e+00> : vector<16x8xf32>
    %59 = tpu.matmul %58, %47, %cst_25 {dimension_numbers = #tpu.dot_dimension_numbers<[1], [0], [0], [1], [0, 0, 1, 1], [], []>} : vector<16x16xf32>, vector<16x8xf32>, vector<16x8xf32> -> vector<16x8xf32>
    %60 = vector.extract_strided_slice %13 {offsets = [0, 24], sizes = [16, 8], strides = [1, 1]} : vector<16x96xf32> to vector<16x8xf32>
    %61 = vector.extract_strided_slice %13 {offsets = [0, 56], sizes = [16, 8], strides = [1, 1]} : vector<16x96xf32> to vector<16x8xf32>
    %62 = vector.extract_strided_slice %13 {offsets = [0, 88], sizes = [16, 8], strides = [1, 1]} : vector<16x96xf32> to vector<16x8xf32>
    %cst_26 = arith.constant dense<0.000000e+00> : vector<16x16xf32>
    %63 = tpu.matmul %60, %61, %cst_26 {dimension_numbers = #tpu.dot_dimension_numbers<[1], [1], [0], [0], [0, 0, 1, 0], [], []>} : vector<16x8xf32>, vector<16x8xf32>, vector<16x16xf32> -> vector<16x16xf32>
    %cst_27 = arith.constant dense<0xFF800000> : vector<16xf32>
    %64 = vector.multi_reduction <maximumf>, %63, %cst_27 [1] : vector<16x16xf32> to vector<16xf32>
    %65 = vector.shape_cast %64 : vector<16xf32> to vector<16x1xf32>
    %66 = vector.broadcast %65 : vector<16x1xf32> to vector<16x16xf32>
    %67 = arith.subf %63, %66 : vector<16x16xf32>
    %68 = math.exp %67 : vector<16x16xf32>
    %cst_28 = arith.constant dense<0.000000e+00> : vector<16xf32>
    %69 = vector.multi_reduction <add>, %68, %cst_28 [1] : vector<16x16xf32> to vector<16xf32>
    %70 = vector.shape_cast %69 : vector<16xf32> to vector<16x1xf32>
    %71 = tpu.reciprocal %70 {approx = true} : vector<16x1xf32> -> vector<16x1xf32>
    %72 = vector.broadcast %71 : vector<16x1xf32> to vector<16x16xf32>
    %73 = arith.mulf %68, %72 : vector<16x16xf32>
    %cst_29 = arith.constant dense<0.000000e+00> : vector<16x8xf32>
    %74 = tpu.matmul %73, %62, %cst_29 {dimension_numbers = #tpu.dot_dimension_numbers<[1], [0], [0], [1], [0, 0, 1, 1], [], []>} : vector<16x16xf32>, vector<16x8xf32>, vector<16x8xf32> -> vector<16x8xf32>
    %75 = tpu.concatenate %29, %44, %59, %74 in 1 : vector<16x8xf32>, vector<16x8xf32>, vector<16x8xf32>, vector<16x8xf32> -> vector<16x32xf32>
    %76 = arith.mulf %75, %3 : vector<16x32xf32>
    %c0_30 = arith.constant 0 : index
    %c0_31 = arith.constant 0 : index
    %c0_32 = arith.constant 0 : index
    %77 = vector.load %arg3[%c0_30, %c0_31, %c0_32] : memref<2x32x32xf32, #tpu.memory_space<vmem>>, vector<1x32x32xf32>
    %78 = vector.shape_cast %77 : vector<1x32x32xf32> to vector<32x32xf32>
    %cst_33 = arith.constant dense<0.000000e+00> : vector<16x32xf32>
    %79 = tpu.matmul %76, %78, %cst_33 {dimension_numbers = #tpu.dot_dimension_numbers<[1], [0], [0], [1], [0, 0, 1, 1], [], []>} : vector<16x32xf32>, vector<32x32xf32>, vector<16x32xf32> -> vector<16x32xf32>
    %80 = arith.addf %79, %14 : vector<16x32xf32>
    %81 = arith.addf %80, %1 : vector<16x32xf32>
    %cst_34 = arith.constant 0.000000e+00 : f32
    %82 = vector.broadcast %cst_34 : f32 to vector<16x32xf32>
    %83 = arith.maximumf %81, %82 : vector<16x32xf32>
    %c1_35 = arith.constant 1 : index
    %c0_36 = arith.constant 0 : index
    %c0_37 = arith.constant 0 : index
    %84 = vector.load %arg4[%c1_35, %c0_36, %c0_37] : memref<3x32x128xf32, #tpu.memory_space<vmem>>, vector<1x32x128xf32>
    %85 = vector.shape_cast %84 : vector<1x32x128xf32> to vector<32x128xf32>
    %cst_38 = arith.constant dense<0.000000e+00> : vector<16x128xf32>
    %86 = tpu.matmul %83, %85, %cst_38 {dimension_numbers = #tpu.dot_dimension_numbers<[1], [0], [0], [1], [0, 0, 1, 1], [], []>} : vector<16x32xf32>, vector<32x128xf32>, vector<16x128xf32> -> vector<16x128xf32>
    %87 = arith.addf %6, %86 : vector<16x128xf32>
    %c1_39 = arith.constant 1 : index
    %c0_40 = arith.constant 0 : index
    %c0_41 = arith.constant 0 : index
    %88 = vector.load %arg1[%c1_39, %c0_40, %c0_41] : memref<2x16x128xf32, #tpu.memory_space<vmem>>, vector<1x16x128xf32>
    %89 = vector.shape_cast %88 : vector<1x16x128xf32> to vector<16x128xf32>
    %c1_42 = arith.constant 1 : index
    %c0_43 = arith.constant 0 : index
    %c0_44 = arith.constant 0 : index
    %90 = vector.load %arg2[%c1_42, %c0_43, %c0_44] : memref<2x32x96xf32, #tpu.memory_space<vmem>>, vector<1x32x96xf32>
    %91 = vector.shape_cast %90 : vector<1x32x96xf32> to vector<32x96xf32>
    %cst_45 = arith.constant dense<0.000000e+00> : vector<16x96xf32>
    %92 = tpu.matmul %83, %91, %cst_45 {dimension_numbers = #tpu.dot_dimension_numbers<[1], [0], [0], [1], [0, 0, 1, 1], [], []>} : vector<16x32xf32>, vector<32x96xf32>, vector<16x96xf32> -> vector<16x96xf32>
    %93 = vector.extract_strided_slice %89 {offsets = [0, 0], sizes = [16, 96], strides = [1, 1]} : vector<16x128xf32> to vector<16x96xf32>
    %94 = arith.addf %92, %93 : vector<16x96xf32>
    %95 = vector.extract_strided_slice %89 {offsets = [0, 96], sizes = [16, 32], strides = [1, 1]} : vector<16x128xf32> to vector<16x32xf32>
    %96 = vector.extract_strided_slice %94 {offsets = [0, 0], sizes = [16, 8], strides = [1, 1]} : vector<16x96xf32> to vector<16x8xf32>
    %97 = vector.extract_strided_slice %94 {offsets = [0, 32], sizes = [16, 8], strides = [1, 1]} : vector<16x96xf32> to vector<16x8xf32>
    %98 = vector.extract_strided_slice %94 {offsets = [0, 64], sizes = [16, 8], strides = [1, 1]} : vector<16x96xf32> to vector<16x8xf32>
    %cst_46 = arith.constant dense<0.000000e+00> : vector<16x16xf32>
    %99 = tpu.matmul %96, %97, %cst_46 {dimension_numbers = #tpu.dot_dimension_numbers<[1], [1], [0], [0], [0, 0, 1, 0], [], []>} : vector<16x8xf32>, vector<16x8xf32>, vector<16x16xf32> -> vector<16x16xf32>
    %cst_47 = arith.constant dense<0xFF800000> : vector<16xf32>
    %100 = vector.multi_reduction <maximumf>, %99, %cst_47 [1] : vector<16x16xf32> to vector<16xf32>
    %101 = vector.shape_cast %100 : vector<16xf32> to vector<16x1xf32>
    %102 = vector.broadcast %101 : vector<16x1xf32> to vector<16x16xf32>
    %103 = arith.subf %99, %102 : vector<16x16xf32>
    %104 = math.exp %103 : vector<16x16xf32>
    %cst_48 = arith.constant dense<0.000000e+00> : vector<16xf32>
    %105 = vector.multi_reduction <add>, %104, %cst_48 [1] : vector<16x16xf32> to vector<16xf32>
    %106 = vector.shape_cast %105 : vector<16xf32> to vector<16x1xf32>
    %107 = tpu.reciprocal %106 {approx = true} : vector<16x1xf32> -> vector<16x1xf32>
    %108 = vector.broadcast %107 : vector<16x1xf32> to vector<16x16xf32>
    %109 = arith.mulf %104, %108 : vector<16x16xf32>
    %cst_49 = arith.constant dense<0.000000e+00> : vector<16x8xf32>
    %110 = tpu.matmul %109, %98, %cst_49 {dimension_numbers = #tpu.dot_dimension_numbers<[1], [0], [0], [1], [0, 0, 1, 1], [], []>} : vector<16x16xf32>, vector<16x8xf32>, vector<16x8xf32> -> vector<16x8xf32>
    %111 = vector.extract_strided_slice %94 {offsets = [0, 8], sizes = [16, 8], strides = [1, 1]} : vector<16x96xf32> to vector<16x8xf32>
    %112 = vector.extract_strided_slice %94 {offsets = [0, 40], sizes = [16, 8], strides = [1, 1]} : vector<16x96xf32> to vector<16x8xf32>
    %113 = vector.extract_strided_slice %94 {offsets = [0, 72], sizes = [16, 8], strides = [1, 1]} : vector<16x96xf32> to vector<16x8xf32>
    %cst_50 = arith.constant dense<0.000000e+00> : vector<16x16xf32>
    %114 = tpu.matmul %111, %112, %cst_50 {dimension_numbers = #tpu.dot_dimension_numbers<[1], [1], [0], [0], [0, 0, 1, 0], [], []>} : vector<16x8xf32>, vector<16x8xf32>, vector<16x16xf32> -> vector<16x16xf32>
    %cst_51 = arith.constant dense<0xFF800000> : vector<16xf32>
    %115 = vector.multi_reduction <maximumf>, %114, %cst_51 [1] : vector<16x16xf32> to vector<16xf32>
    %116 = vector.shape_cast %115 : vector<16xf32> to vector<16x1xf32>
    %117 = vector.broadcast %116 : vector<16x1xf32> to vector<16x16xf32>
    %118 = arith.subf %114, %117 : vector<16x16xf32>
    %119 = math.exp %118 : vector<16x16xf32>
    %cst_52 = arith.constant dense<0.000000e+00> : vector<16xf32>
    %120 = vector.multi_reduction <add>, %119, %cst_52 [1] : vector<16x16xf32> to vector<16xf32>
    %121 = vector.shape_cast %120 : vector<16xf32> to vector<16x1xf32>
    %122 = tpu.reciprocal %121 {approx = true} : vector<16x1xf32> -> vector<16x1xf32>
    %123 = vector.broadcast %122 : vector<16x1xf32> to vector<16x16xf32>
    %124 = arith.mulf %119, %123 : vector<16x16xf32>
    %cst_53 = arith.constant dense<0.000000e+00> : vector<16x8xf32>
    %125 = tpu.matmul %124, %113, %cst_53 {dimension_numbers = #tpu.dot_dimension_numbers<[1], [0], [0], [1], [0, 0, 1, 1], [], []>} : vector<16x16xf32>, vector<16x8xf32>, vector<16x8xf32> -> vector<16x8xf32>
    %126 = vector.extract_strided_slice %94 {offsets = [0, 16], sizes = [16, 8], strides = [1, 1]} : vector<16x96xf32> to vector<16x8xf32>
    %127 = vector.extract_strided_slice %94 {offsets = [0, 48], sizes = [16, 8], strides = [1, 1]} : vector<16x96xf32> to vector<16x8xf32>
    %128 = vector.extract_strided_slice %94 {offsets = [0, 80], sizes = [16, 8], strides = [1, 1]} : vector<16x96xf32> to vector<16x8xf32>
    %cst_54 = arith.constant dense<0.000000e+00> : vector<16x16xf32>
    %129 = tpu.matmul %126, %127, %cst_54 {dimension_numbers = #tpu.dot_dimension_numbers<[1], [1], [0], [0], [0, 0, 1, 0], [], []>} : vector<16x8xf32>, vector<16x8xf32>, vector<16x16xf32> -> vector<16x16xf32>
    %cst_55 = arith.constant dense<0xFF800000> : vector<16xf32>
    %130 = vector.multi_reduction <maximumf>, %129, %cst_55 [1] : vector<16x16xf32> to vector<16xf32>
    %131 = vector.shape_cast %130 : vector<16xf32> to vector<16x1xf32>
    %132 = vector.broadcast %131 : vector<16x1xf32> to vector<16x16xf32>
    %133 = arith.subf %129, %132 : vector<16x16xf32>
    %134 = math.exp %133 : vector<16x16xf32>
    %cst_56 = arith.constant dense<0.000000e+00> : vector<16xf32>
    %135 = vector.multi_reduction <add>, %134, %cst_56 [1] : vector<16x16xf32> to vector<16xf32>
    %136 = vector.shape_cast %135 : vector<16xf32> to vector<16x1xf32>
    %137 = tpu.reciprocal %136 {approx = true} : vector<16x1xf32> -> vector<16x1xf32>
    %138 = vector.broadcast %137 : vector<16x1xf32> to vector<16x16xf32>
    %139 = arith.mulf %134, %138 : vector<16x16xf32>
    %cst_57 = arith.constant dense<0.000000e+00> : vector<16x8xf32>
    %140 = tpu.matmul %139, %128, %cst_57 {dimension_numbers = #tpu.dot_dimension_numbers<[1], [0], [0], [1], [0, 0, 1, 1], [], []>} : vector<16x16xf32>, vector<16x8xf32>, vector<16x8xf32> -> vector<16x8xf32>
    %141 = vector.extract_strided_slice %94 {offsets = [0, 24], sizes = [16, 8], strides = [1, 1]} : vector<16x96xf32> to vector<16x8xf32>
    %142 = vector.extract_strided_slice %94 {offsets = [0, 56], sizes = [16, 8], strides = [1, 1]} : vector<16x96xf32> to vector<16x8xf32>
    %143 = vector.extract_strided_slice %94 {offsets = [0, 88], sizes = [16, 8], strides = [1, 1]} : vector<16x96xf32> to vector<16x8xf32>
    %cst_58 = arith.constant dense<0.000000e+00> : vector<16x16xf32>
    %144 = tpu.matmul %141, %142, %cst_58 {dimension_numbers = #tpu.dot_dimension_numbers<[1], [1], [0], [0], [0, 0, 1, 0], [], []>} : vector<16x8xf32>, vector<16x8xf32>, vector<16x16xf32> -> vector<16x16xf32>
    %cst_59 = arith.constant dense<0xFF800000> : vector<16xf32>
    %145 = vector.multi_reduction <maximumf>, %144, %cst_59 [1] : vector<16x16xf32> to vector<16xf32>
    %146 = vector.shape_cast %145 : vector<16xf32> to vector<16x1xf32>
    %147 = vector.broadcast %146 : vector<16x1xf32> to vector<16x16xf32>
    %148 = arith.subf %144, %147 : vector<16x16xf32>
    %149 = math.exp %148 : vector<16x16xf32>
    %cst_60 = arith.constant dense<0.000000e+00> : vector<16xf32>
    %150 = vector.multi_reduction <add>, %149, %cst_60 [1] : vector<16x16xf32> to vector<16xf32>
    %151 = vector.shape_cast %150 : vector<16xf32> to vector<16x1xf32>
    %152 = tpu.reciprocal %151 {approx = true} : vector<16x1xf32> -> vector<16x1xf32>
    %153 = vector.broadcast %152 : vector<16x1xf32> to vector<16x16xf32>
    %154 = arith.mulf %149, %153 : vector<16x16xf32>
    %cst_61 = arith.constant dense<0.000000e+00> : vector<16x8xf32>
    %155 = tpu.matmul %154, %143, %cst_61 {dimension_numbers = #tpu.dot_dimension_numbers<[1], [0], [0], [1], [0, 0, 1, 1], [], []>} : vector<16x16xf32>, vector<16x8xf32>, vector<16x8xf32> -> vector<16x8xf32>
    %156 = tpu.concatenate %110, %125, %140, %155 in 1 : vector<16x8xf32>, vector<16x8xf32>, vector<16x8xf32>, vector<16x8xf32> -> vector<16x32xf32>
    %157 = arith.mulf %156, %3 : vector<16x32xf32>
    %c1_62 = arith.constant 1 : index
    %c0_63 = arith.constant 0 : index
    %c0_64 = arith.constant 0 : index
    %158 = vector.load %arg3[%c1_62, %c0_63, %c0_64] : memref<2x32x32xf32, #tpu.memory_space<vmem>>, vector<1x32x32xf32>
    %159 = vector.shape_cast %158 : vector<1x32x32xf32> to vector<32x32xf32>
    %cst_65 = arith.constant dense<0.000000e+00> : vector<16x32xf32>
    %160 = tpu.matmul %157, %159, %cst_65 {dimension_numbers = #tpu.dot_dimension_numbers<[1], [0], [0], [1], [0, 0, 1, 1], [], []>} : vector<16x32xf32>, vector<32x32xf32>, vector<16x32xf32> -> vector<16x32xf32>
    %161 = arith.addf %160, %95 : vector<16x32xf32>
    %162 = arith.addf %161, %83 : vector<16x32xf32>
    %cst_66 = arith.constant 0.000000e+00 : f32
    %163 = vector.broadcast %cst_66 : f32 to vector<16x32xf32>
    %164 = arith.maximumf %162, %163 : vector<16x32xf32>
    %c2 = arith.constant 2 : index
    %c0_67 = arith.constant 0 : index
    %c0_68 = arith.constant 0 : index
    %165 = vector.load %arg4[%c2, %c0_67, %c0_68] : memref<3x32x128xf32, #tpu.memory_space<vmem>>, vector<1x32x128xf32>
    %166 = vector.shape_cast %165 : vector<1x32x128xf32> to vector<32x128xf32>
    %cst_69 = arith.constant dense<0.000000e+00> : vector<16x128xf32>
    %167 = tpu.matmul %164, %166, %cst_69 {dimension_numbers = #tpu.dot_dimension_numbers<[1], [0], [0], [1], [0, 0, 1, 1], [], []>} : vector<16x32xf32>, vector<32x128xf32>, vector<16x128xf32> -> vector<16x128xf32>
    %168 = arith.addf %87, %167 : vector<16x128xf32>
    %c0_70 = arith.constant 0 : index
    %c0_71 = arith.constant 0 : index
    %169 = vector.load %arg5[%c0_70, %c0_71] : memref<1x128xf32, #tpu.memory_space<vmem>>, vector<1x128xf32>
    %170 = vector.broadcast %169 : vector<1x128xf32> to vector<16x128xf32>
    %171 = arith.addf %168, %170 : vector<16x128xf32>
    %cst_72 = arith.constant 0.000000e+00 : f32
    %172 = vector.broadcast %cst_72 : f32 to vector<16x128xf32>
    %173 = arith.maximumf %171, %172 : vector<16x128xf32>
    %c0_73 = arith.constant 0 : index
    %c0_74 = arith.constant 0 : index
    %174 = vector.load %arg6[%c0_73, %c0_74] : memref<16x128xf32, #tpu.memory_space<vmem>>, vector<16x128xf32>
    tpu.vector_store %arg6[%c0_73, %c0_74], %173 {strides = array<i32>} : memref<16x128xf32, #tpu.memory_space<vmem>>, vector<16x128xf32>,
    return
  }
}

</mosaic_0001>

<llo_original>
// kernel: graph_transformer_forward.1
$region0: #{graph_transformer_forward.1}
  #allocation0 [shape = 'u32[]', space=smem, size = 0x4, offset = 0x4, fixed_abs, tag = 'smem constant byte address 0x4 - core index']
  #allocation1 [shape = 'u32[144,128]{1,0:T(1,128)}', space=vmem, size = 0x12000, scoped, tag = 'internal scratch']
  %s0 = inlined_call_operand.vmem [shape: f32[2,16,32], index: 0, kind: input, shape index: {}]
  %s1 = inlined_call_operand.vmem [shape: f32[2,16,128], index: 1, kind: input, shape index: {}]
  %s2 = inlined_call_operand.vmem [shape: f32[2,32,96], index: 2, kind: input, shape index: {}]
  %s3 = inlined_call_operand.vmem [shape: f32[2,32,32], index: 3, kind: input, shape index: {}]
  %s4 = inlined_call_operand.vmem [shape: f32[3,32,128], index: 4, kind: input, shape index: {}]
  %s5 = inlined_call_operand.vmem [shape: f32[1,128], index: 5, kind: input, shape index: {}]
  %s6 = inlined_call_operand.hbm [shape: f32[16,128], index: 6, kind: output, shape index: {}]
  %s7 = sld [smem:[#allocation0]]
  $region34: #{graph_transformer_forward.1} parent=0
    _
  %s9 = ssub.s32 1, %s7
  %s10 = scalar_select 0, %s9, %s7
  $region1: #{graph_transformer_forward.1} parent=0
    #allocation2 [shape = 'u8[8192]{0}', space=vmem, size = 0x2000, scoped, tag = 'output window, operand 0, single buffered']
    #allocation3 [shape = 's32[1]{0}', space=sflag, size = 0x4, scoped, tag = 'scoped memory for graph_transformer_forward.1']
    %11 = vsyncpa [#allocation3], 0
    // Predicated region
    $region2: #{graph_transformer_forward.1} parent=1 // pred_check
      _
    $region3: #{graph_transformer_forward.1} parent=1 // pred_check_branch
      %13 = sbr.rel (0) target = $region5
    $region4: #{graph_transformer_forward.1} parent=1 // pred_region
      _
    $region5: #{graph_transformer_forward.1} parent=1 // pred_fallthru
      _
    // Predicated region
    $region6: #{graph_transformer_forward.1} parent=1 // pred_check
      _
    $region7: #{graph_transformer_forward.1} parent=1 // pred_check_branch
      %15 = sbr.rel (0) target = $region9
    $region8: #{graph_transformer_forward.1} parent=1 // pred_region
      _
    $region9: #{graph_transformer_forward.1} parent=1 // pred_fallthru
      _
    // Predicated region
    $region10: #{graph_transformer_forward.1} parent=1 // pred_check
      _
    $region11: #{graph_transformer_forward.1} parent=1 // pred_check_branch
      %17 = sbr.rel (0) target = $region13
    $region12: #{graph_transformer_forward.1} parent=1 // pred_region
      _
    $region13: #{graph_transformer_forward.1} parent=1 // pred_fallthru
      _
    // Predicated region
    $region14: #{graph_transformer_forward.1} parent=1 // pred_check
      _
    $region15: #{graph_transformer_forward.1} parent=1 // pred_check_branch
      %19 = sbr.rel (0) target = $region17
    $region16: #{graph_transformer_forward.1} parent=1 // pred_region
      _
    $region17: #{graph_transformer_forward.1} parent=1 // pred_fallthru
      _
    // Predicated region
    $region18: #{graph_transformer_forward.1} parent=1 // pred_check
      _
    $region19: #{graph_transformer_forward.1} parent=1 // pred_check_branch
      %21 = sbr.rel (0) target = $region21
    $region20: #{graph_transformer_forward.1} parent=1 // pred_region
      _
    $region21: #{graph_transformer_forward.1} parent=1 // pred_fallthru
      _
    // Predicated region
    $region22: #{graph_transformer_forward.1} parent=1 // pred_check
      _
    $region23: #{graph_transformer_forward.1} parent=1 // pred_check_branch
      %23 = sbr.rel (0) target = $region25
    $region24: #{graph_transformer_forward.1} parent=1 // pred_region
      _
    $region25: #{graph_transformer_forward.1} parent=1 // pred_fallthru
      _
    %v24 = vld [vmem:[%s0] sm:$0xff]
    %v25 = vld [vmem:[%s0 + $0x8] sm:$0xff]
    %s26 = scalar_lea.vmem %s0, 16
    %v27 = vld [vmem:[%s26] sm:$0xff]
    %v28 = vld [vmem:[%s26 + $0x8] sm:$0xff]
    %v29 = vld [vmem:[%s4] sm:$0xff]
    %v30 = vld [vmem:[%s4 + $0x8] sm:$0xff]
    %v31 = vld [vmem:[%s4 + $0x10] sm:$0xff]
    %v32 = vld [vmem:[%s4 + $0x18] sm:$0xff]
    %v33 = vld [vmem:[%s1] sm:$0xff]
    %v34 = vld [vmem:[%s1 + $0x8] sm:$0xff]
    %v35 = vld [vmem:[%s2] sm:$0xff]
    %v36 = vld [vmem:[%s2 + $0x8] sm:$0xff]
    %v37 = vld [vmem:[%s2 + $0x10] sm:$0xff]
    %v38 = vld [vmem:[%s2 + $0x18] sm:$0xff]
    %vm39 = vcmask 261120
    %v41 = vsel %vm39, %v24, 0
    %v44 = vsel %vm39, %v25, 0
    %46 = vmatprep.subr.mxu0 0.0
    %47 = vmatpush1.msra.mxu0 %v35
    %48 = vmatprep.subr.mxu0 0.0
    %49 = vmatpush1.msra.mxu0 %v36
    %50 = vmatprep.subr.mxu0 0.0
    %51 = vmatpush1.msra.mxu0 %v37
    %52 = vmatprep.subr.mxu0 0.0
    %53 = vmatpush1.msra.mxu0 %v38
    %54 = vmatprep.subr.mxu0 0.0
    %55 = vmatpush1.msra.mxu0 0.0
    %56 = vmatprep.subr.mxu0 0.0
    %57 = vmatpush1.msra.mxu0 0.0
    %58 = vmatprep.subr.mxu0 0.0
    %59 = vmatpush1.msra.mxu0 0.0
    %60 = vmatprep.subr.mxu0 0.0
    %61 = vmatpush1.msra.mxu0 0.0
    %62 = vmatprep.subr.mxu0 0.0
    %63 = vmatpush1.msra.mxu0 0.0
    %64 = vmatprep.subr.mxu0 0.0
    %65 = vmatpush1.msra.mxu0 0.0
    %66 = vmatprep.subr.mxu0 0.0
    %67 = vmatpush1.msra.mxu0 0.0
    %68 = vmatprep.subr.mxu0 0.0
    %69 = vmatpush1.msra.mxu0 0.0
    %70 = vmatprep.subr.mxu0 0.0
    %71 = vmatpush1.msra.mxu0 0.0
    %72 = vmatprep.subr.mxu0 0.0
    %73 = vmatpush1.msra.mxu0 0.0
    %74 = vmatprep.subr.mxu0 0.0
    %75 = vmatpush1.msra.mxu0 0.0
    %76 = vmatprep.subr.mxu0 0.0
    %77 = vmatpush1.msra.mxu0 0.0
    %78 = vmatprep.subr.mxu0 0.0
    %79 = vmatpush1.msra.mxu0 0.0
    %80 = vmatprep.subr.mxu0 0.0
    %81 = vmatpush1.msra.mxu0 0.0
    %82 = vmatprep.subr.mxu0 0.0
    %83 = vmatpush1.msra.mxu0 0.0
    %84 = vmatprep.subr.mxu0 0.0
    %85 = vmatpush1.msra.mxu0 0.0
    %86 = vmatprep.subr.mxu0 0.0
    %87 = vmatpush1.msra.mxu0 0.0
    %88 = vmatprep.subr.mxu0 0.0
    %89 = vmatpush1.msra.mxu0 0.0
    %90 = vmatprep.subr.mxu0 0.0
    %91 = vmatpush1.msra.mxu0 0.0
    %92 = vmatprep.subr.mxu0 0.0
    %93 = vmatpush1.msra.mxu0 0.0
    %94 = vmatprep.subr.mxu0 0.0
    %95 = vmatpush1.msra.mxu0 0.0
    %96 = vmatprep.subr.mxu0 0.0
    %97 = vmatpush1.msra.mxu0 0.0
    %98 = vmatprep.subr.mxu0 0.0
    %99 = vmatpush1.msra.mxu0 0.0
    %100 = vmatprep.subr.mxu0 0.0
    %101 = vmatpush1.msra.mxu0 0.0
    %102 = vmatprep.subr.mxu0 0.0
    %103 = vmatpush1.msra.mxu0 0.0
    %104 = vmatprep.subr.mxu0 0.0
    %105 = vmatpush1.msra.mxu0 0.0
    %106 = vmatprep.subr.mxu0 0.0
    %107 = vmatpush1.msra.mxu0 0.0
    %108 = vmatprep.subr.mxu0 0.0
    %109 = vmatpush1.msra.mxu0 0.0
    %110 = vmatprep.mubr.f32.mxu0 0.0
    %111 = vmatmul.mubr.f32.gmra.mrb[0].mxu0 %v41
    %v112 = vpop.f32.mrb[0].mxu0
    %v113 = vadd.f32 %v33, %v112
    %v114 = vpop.f32.mrb[0].mxu0
    %115 = vmatprep.mubr.f32.mxu0 0.0
    %116 = vmatmul.mubr.f32.gmra.mrb[0].mxu0 %v44
    %v117 = vpop.f32.mrb[0].mxu0
    %v118 = vadd.f32 %v34, %v117
    %v119 = vpop.f32.mrb[0].mxu0
    %120 = vdwg.mxu0
    %123 = vrot.lane.b32.xlu0 %v113, 96
    %v124 = vpop.permute.xlu0 %123
    %125 = vrot.lane.b32.xlu0 %v118, 96
    %v126 = vpop.permute.xlu0 %125
    %vm127 = vcmask 64512
    %v128 = vsel %vm127, %v113, 0
    %v130 = vsel %vm127, %v118, 0
    %v132 = vsel %vm127, %v124, 0
    %v134 = vsel %vm127, %v126, 0
    %136 = vmatprep.subr.mxu0 0.0
    %137 = vmatpush1.xpose.msra.mxu0 %v132
    %138 = vmatprep.subr.mxu0 0.0
    %139 = vmatpush1.xpose.msra.mxu0 %v134
    %140 = vmatprep.subr.mxu0 0.0
    %141 = vmatpush1.xpose.msra.mxu0 0.0
    %142 = vmatprep.subr.mxu0 0.0
    %143 = vmatpush1.xpose.msra.mxu0 0.0
    %144 = vmatprep.subr.mxu0 0.0
    %145 = vmatpush1.xpose.msra.mxu0 0.0
    %146 = vmatprep.subr.mxu0 0.0
    %147 = vmatpush1.xpose.msra.mxu0 0.0
    %148 = vmatprep.subr.mxu0 0.0
    %149 = vmatpush1.xpose.msra.mxu0 0.0
    %150 = vmatprep.subr.mxu0 0.0
    %151 = vmatpush1.xpose.msra.mxu0 0.0
    %152 = vmatprep.subr.mxu0 0.0
    %153 = vmatpush1.xpose.msra.mxu0 0.0
    %154 = vmatprep.subr.mxu0 0.0
    %155 = vmatpush1.xpose.msra.mxu0 0.0
    %156 = vmatprep.subr.mxu0 0.0
    %157 = vmatpush1.xpose.msra.mxu0 0.0
    %158 = vmatprep.subr.mxu0 0.0
    %159 = vmatpush1.xpose.msra.mxu0 0.0
    %160 = vmatprep.subr.mxu0 0.0
    %161 = vmatpush1.xpose.msra.mxu0 0.0
    %162 = vmatprep.subr.mxu0 0.0
    %163 = vmatpush1.xpose.msra.mxu0 0.0
    %164 = vmatprep.subr.mxu0 0.0
    %165 = vmatpush1.xpose.msra.mxu0 0.0
    %166 = vmatprep.subr.mxu0 0.0
    %167 = vmatpush1.xpose.msra.mxu0 0.0
    %168 = vmatprep.subr.mxu0 0.0
    %169 = vmatpush1.xpose.msra.mxu0 0.0
    %170 = vmatprep.subr.mxu0 0.0
    %171 = vmatpush1.xpose.msra.mxu0 0.0
    %172 = vmatprep.subr.mxu0 0.0
    %173 = vmatpush1.xpose.msra.mxu0 0.0
    %174 = vmatprep.subr.mxu0 0.0
    %175 = vmatpush1.xpose.msra.mxu0 0.0
    %176 = vmatprep.subr.mxu0 0.0
    %177 = vmatpush1.xpose.msra.mxu0 0.0
    %178 = vmatprep.subr.mxu0 0.0
    %179 = vmatpush1.xpose.msra.mxu0 0.0
    %180 = vmatprep.subr.mxu0 0.0
    %181 = vmatpush1.xpose.msra.mxu0 0.0
    %182 = vmatprep.subr.mxu0 0.0
    %183 = vmatpush1.xpose.msra.mxu0 0.0
    %184 = vmatprep.subr.mxu0 0.0
    %185 = vmatpush1.xpose.msra.mxu0 0.0
    %186 = vmatprep.subr.mxu0 0.0
    %187 = vmatpush1.xpose.msra.mxu0 0.0
    %188 = vmatprep.subr.mxu0 0.0
    %189 = vmatpush1.xpose.msra.mxu0 0.0
    %190 = vmatprep.subr.mxu0 0.0
    %191 = vmatpush1.xpose.msra.mxu0 0.0
    %192 = vmatprep.subr.mxu0 0.0
    %193 = vmatpush1.xpose.msra.mxu0 0.0
    %194 = vmatprep.subr.mxu0 0.0
    %195 = vmatpush1.xpose.msra.mxu0 0.0
    %196 = vmatprep.subr.mxu0 0.0
    %197 = vmatpush1.xpose.msra.mxu0 0.0
    %198 = vmatprep.subr.mxu0 0.0
    %199 = vmatpush1.xpose.msra.mxu0 0.0
    %200 = vmatprep.mubr.f32.mxu0 0.0
    %201 = vmatmul.mubr.f32.gmra.mrb[0].mxu0 %v128
    %v202 = vpop.f32.mrb[0].mxu0
    %v203 = vadd.f32 0.0, %v202
    %v204 = vpop.f32.mrb[0].mxu0
    %205 = vmatprep.mubr.f32.mxu0 0.0
    %206 = vmatmul.mubr.f32.gmra.mrb[0].mxu0 %v130
    %v207 = vpop.f32.mrb[0].mxu0
    %v208 = vadd.f32 0.0, %v207
    %v209 = vpop.f32.mrb[0].mxu0
    %210 = vdwg.mxu0
    %vm211 = vcmask 130048
    %v212 = vsel %vm211, %v203, -inf
    %213 = vmax.xlane.f32.xlu0 %v212
    %v214 = vpop.xlane.xlu0 %213
    %v215 = vsel %vm211, %v208, -inf
    %216 = vmax.xlane.f32.xlu0 %v215
    %v217 = vpop.xlane.xlu0 %216
    %v218 = vsub.f32 %v203, %v214
    %v219 = vsub.f32 %v208, %v217
    %v220 = vmul.f32 %v218, 1.442695
    %v221 = vpow.pop %v220
    %v222 = vmul.f32 %v219, 1.442695
    %v223 = vpow.pop %v222
    %v224 = vsel %vm211, %v221, 0.0
    %225 = vadd.xlane.f32.xlu0 %v224
    %v226 = vpop.xlane.xlu0 %225
    %v227 = vsel %vm211, %v223, 0.0
    %228 = vadd.xlane.f32.xlu0 %v227
    %v229 = vpop.xlane.xlu0 %228
    %v230 = vrcp.pop %v226
    %v231 = vrcp.pop %v229
    %v232 = vmul.f32 %v221, %v230
    %v233 = vmul.f32 %v223, %v231
    %234 = vrot.lane.b32.xlu0 %v113, 64
    %v235 = vpop.permute.xlu0 %234
    %236 = vrot.lane.b32.xlu0 %v118, 64
    %v237 = vpop.permute.xlu0 %236
    %v241 = vsel %vm211, %v232, 0
    %v244 = vsel %vm211, %v233, 0
    %246 = vmatprep.subr.mxu0 0.0
    %247 = vmatpush1.msra.mxu0 %v235
    %248 = vmatprep.subr.mxu0 0.0
    %249 = vmatpush1.msra.mxu0 %v237
    %250 = vmatprep.subr.mxu0 0.0
    %251 = vmatpush1.msra.mxu0 0.0
    %252 = vmatprep.subr.mxu0 0.0
    %253 = vmatpush1.msra.mxu0 0.0
    %254 = vmatprep.subr.mxu0 0.0
    %255 = vmatpush1.msra.mxu0 0.0
    %256 = vmatprep.subr.mxu0 0.0
    %257 = vmatpush1.msra.mxu0 0.0
    %258 = vmatprep.subr.mxu0 0.0
    %259 = vmatpush1.msra.mxu0 0.0
    %260 = vmatprep.subr.mxu0 0.0
    %261 = vmatpush1.msra.mxu0 0.0
    %262 = vmatprep.subr.mxu0 0.0
    %263 = vmatpush1.msra.mxu0 0.0
    %264 = vmatprep.subr.mxu0 0.0
    %265 = vmatpush1.msra.mxu0 0.0
    %266 = vmatprep.subr.mxu0 0.0
    %267 = vmatpush1.msra.mxu0 0.0
    %268 = vmatprep.subr.mxu0 0.0
    %269 = vmatpush1.msra.mxu0 0.0
    %270 = vmatprep.subr.mxu0 0.0
    %271 = vmatpush1.msra.mxu0 0.0
    %272 = vmatprep.subr.mxu0 0.0
    %273 = vmatpush1.msra.mxu0 0.0
    %274 = vmatprep.subr.mxu0 0.0
    %275 = vmatpush1.msra.mxu0 0.0
    %276 = vmatprep.subr.mxu0 0.0
    %277 = vmatpush1.msra.mxu0 0.0
    %278 = vmatprep.subr.mxu0 0.0
    %279 = vmatpush1.msra.mxu0 0.0
    %280 = vmatprep.subr.mxu0 0.0
    %281 = vmatpush1.msra.mxu0 0.0
    %282 = vmatprep.subr.mxu0 0.0
    %283 = vmatpush1.msra.mxu0 0.0
    %284 = vmatprep.subr.mxu0 0.0
    %285 = vmatpush1.msra.mxu0 0.0
    %286 = vmatprep.subr.mxu0 0.0
    %287 = vmatpush1.msra.mxu0 0.0
    %288 = vmatprep.subr.mxu0 0.0
    %289 = vmatpush1.msra.mxu0 0.0
    %290 = vmatprep.subr.mxu0 0.0
    %291 = vmatpush1.msra.mxu0 0.0
    %292 = vmatprep.subr.mxu0 0.0
    %293 = vmatpush1.msra.mxu0 0.0
    %294 = vmatprep.subr.mxu0 0.0
    %295 = vmatpush1.msra.mxu0 0.0
    %296 = vmatprep.subr.mxu0 0.0
    %297 = vmatpush1.msra.mxu0 0.0
    %298 = vmatprep.subr.mxu0 0.0
    %299 = vmatpush1.msra.mxu0 0.0
    %300 = vmatprep.subr.mxu0 0.0
    %301 = vmatpush1.msra.mxu0 0.0
    %302 = vmatprep.subr.mxu0 0.0
    %303 = vmatpush1.msra.mxu0 0.0
    %304 = vmatprep.subr.mxu0 0.0
    %305 = vmatpush1.msra.mxu0 0.0
    %306 = vmatprep.subr.mxu0 0.0
    %307 = vmatpush1.msra.mxu0 0.0
    %308 = vmatprep.subr.mxu0 0.0
    %309 = vmatpush1.msra.mxu0 0.0
    %310 = vmatprep.mubr.f32.mxu0 0.0
    %311 = vmatmul.mubr.f32.gmra.mrb[0].mxu0 %v241
    %v312 = vpop.f32.mrb[0].mxu0
    %v313 = vadd.f32 0.0, %v312
    %v314 = vpop.f32.mrb[0].mxu0
    %315 = vmatprep.mubr.f32.mxu0 0.0
    %316 = vmatmul.mubr.f32.gmra.mrb[0].mxu0 %v244
    %v317 = vpop.f32.mrb[0].mxu0
    %v318 = vadd.f32 0.0, %v317
    %v319 = vpop.f32.mrb[0].mxu0
    %320 = vdwg.mxu0
    %321 = vrot.lane.b32.xlu0 %v113, 120
    %v322 = vpop.permute.xlu0 %321
    %323 = vrot.lane.b32.xlu0 %v118, 120
    %v324 = vpop.permute.xlu0 %323
    %325 = vrot.lane.b32.xlu0 %v113, 88
    %v326 = vpop.permute.xlu0 %325
    %327 = vrot.lane.b32.xlu0 %v118, 88
    %v328 = vpop.permute.xlu0 %327
    %v329 = vsel %vm127, %v322, 0
    %v331 = vsel %vm127, %v324, 0
    %v333 = vsel %vm127, %v326, 0
    %v335 = vsel %vm127, %v328, 0
    %337 = vmatprep.subr.mxu0 0.0
    %338 = vmatpush1.xpose.msra.mxu0 %v333
    %339 = vmatprep.subr.mxu0 0.0
    %340 = vmatpush1.xpose.msra.mxu0 %v335
    %341 = vmatprep.subr.mxu0 0.0
    %342 = vmatpush1.xpose.msra.mxu0 0.0
    %343 = vmatprep.subr.mxu0 0.0
    %344 = vmatpush1.xpose.msra.mxu0 0.0
    %345 = vmatprep.subr.mxu0 0.0
    %346 = vmatpush1.xpose.msra.mxu0 0.0
    %347 = vmatprep.subr.mxu0 0.0
    %348 = vmatpush1.xpose.msra.mxu0 0.0
    %349 = vmatprep.subr.mxu0 0.0
    %350 = vmatpush1.xpose.msra.mxu0 0.0
    %351 = vmatprep.subr.mxu0 0.0
    %352 = vmatpush1.xpose.msra.mxu0 0.0
    %353 = vmatprep.subr.mxu0 0.0
    %354 = vmatpush1.xpose.msra.mxu0 0.0
    %355 = vmatprep.subr.mxu0 0.0
    %356 = vmatpush1.xpose.msra.mxu0 0.0
    %357 = vmatprep.subr.mxu0 0.0
    %358 = vmatpush1.xpose.msra.mxu0 0.0
    %359 = vmatprep.subr.mxu0 0.0
    %360 = vmatpush1.xpose.msra.mxu0 0.0
    %361 = vmatprep.subr.mxu0 0.0
    %362 = vmatpush1.xpose.msra.mxu0 0.0
    %363 = vmatprep.subr.mxu0 0.0
    %364 = vmatpush1.xpose.msra.mxu0 0.0
    %365 = vmatprep.subr.mxu0 0.0
    %366 = vmatpush1.xpose.msra.mxu0 0.0
    %367 = vmatprep.subr.mxu0 0.0
    %368 = vmatpush1.xpose.msra.mxu0 0.0
    %369 = vmatprep.subr.mxu0 0.0
    %370 = vmatpush1.xpose.msra.mxu0 0.0
    %371 = vmatprep.subr.mxu0 0.0
    %372 = vmatpush1.xpose.msra.mxu0 0.0
    %373 = vmatprep.subr.mxu0 0.0
    %374 = vmatpush1.xpose.msra.mxu0 0.0
    %375 = vmatprep.subr.mxu0 0.0
    %376 = vmatpush1.xpose.msra.mxu0 0.0
    %377 = vmatprep.subr.mxu0 0.0
    %378 = vmatpush1.xpose.msra.mxu0 0.0
    %379 = vmatprep.subr.mxu0 0.0
    %380 = vmatpush1.xpose.msra.mxu0 0.0
    %381 = vmatprep.subr.mxu0 0.0
    %382 = vmatpush1.xpose.msra.mxu0 0.0
    %383 = vmatprep.subr.mxu0 0.0
    %384 = vmatpush1.xpose.msra.mxu0 0.0
    %385 = vmatprep.subr.mxu0 0.0
    %386 = vmatpush1.xpose.msra.mxu0 0.0
    %387 = vmatprep.subr.mxu0 0.0
    %388 = vmatpush1.xpose.msra.mxu0 0.0
    %389 = vmatprep.subr.mxu0 0.0
    %390 = vmatpush1.xpose.msra.mxu0 0.0
    %391 = vmatprep.subr.mxu0 0.0
    %392 = vmatpush1.xpose.msra.mxu0 0.0
    %393 = vmatprep.subr.mxu0 0.0
    %394 = vmatpush1.xpose.msra.mxu0 0.0
    %395 = vmatprep.subr.mxu0 0.0
    %396 = vmatpush1.xpose.msra.mxu0 0.0
    %397 = vmatprep.subr.mxu0 0.0
    %398 = vmatpush1.xpose.msra.mxu0 0.0
    %399 = vmatprep.subr.mxu0 0.0
    %400 = vmatpush1.xpose.msra.mxu0 0.0
    %401 = vmatprep.mubr.f32.mxu0 0.0
    %402 = vmatmul.mubr.f32.gmra.mrb[0].mxu0 %v329
    %v403 = vpop.f32.mrb[0].mxu0
    %v404 = vadd.f32 0.0, %v403
    %v405 = vpop.f32.mrb[0].mxu0
    %406 = vmatprep.mubr.f32.mxu0 0.0
    %407 = vmatmul.mubr.f32.gmra.mrb[0].mxu0 %v331
    %v408 = vpop.f32.mrb[0].mxu0
    %v409 = vadd.f32 0.0, %v408
    %v410 = vpop.f32.mrb[0].mxu0
    %411 = vdwg.mxu0
    %v412 = vsel %vm211, %v404, -inf
    %413 = vmax.xlane.f32.xlu0 %v412
    %v414 = vpop.xlane.xlu0 %413
    %v415 = vsel %vm211, %v409, -inf
    %416 = vmax.xlane.f32.xlu0 %v415
    %v417 = vpop.xlane.xlu0 %416
    %v418 = vsub.f32 %v404, %v414
    %v419 = vsub.f32 %v409, %v417
    %v420 = vmul.f32 %v418, 1.442695
    %v421 = vpow.pop %v420
    %v422 = vmul.f32 %v419, 1.442695
    %v423 = vpow.pop %v422
    %v424 = vsel %vm211, %v421, 0.0
    %425 = vadd.xlane.f32.xlu0 %v424
    %v426 = vpop.xlane.xlu0 %425
    %v427 = vsel %vm211, %v423, 0.0
    %428 = vadd.xlane.f32.xlu0 %v427
    %v429 = vpop.xlane.xlu0 %428
    %v430 = vrcp.pop %v426
    %v431 = vrcp.pop %v429
    %v432 = vmul.f32 %v421, %v430
    %v433 = vmul.f32 %v423, %v431
    %434 = vrot.lane.b32.xlu0 %v113, 56
    %v435 = vpop.permute.xlu0 %434
    %436 = vrot.lane.b32.xlu0 %v118, 56
    %v437 = vpop.permute.xlu0 %436
    %v441 = vsel %vm211, %v432, 0
    %v444 = vsel %vm211, %v433, 0
    %446 = vmatprep.subr.mxu0 0.0
    %447 = vmatpush1.msra.mxu0 %v435
    %448 = vmatprep.subr.mxu0 0.0
    %449 = vmatpush1.msra.mxu0 %v437
    %450 = vmatprep.subr.mxu0 0.0
    %451 = vmatpush1.msra.mxu0 0.0
    %452 = vmatprep.subr.mxu0 0.0
    %453 = vmatpush1.msra.mxu0 0.0
    %454 = vmatprep.subr.mxu0 0.0
    %455 = vmatpush1.msra.mxu0 0.0
    %456 = vmatprep.subr.mxu0 0.0
    %457 = vmatpush1.msra.mxu0 0.0
    %458 = vmatprep.subr.mxu0 0.0
    %459 = vmatpush1.msra.mxu0 0.0
    %460 = vmatprep.subr.mxu0 0.0
    %461 = vmatpush1.msra.mxu0 0.0
    %462 = vmatprep.subr.mxu0 0.0
    %463 = vmatpush1.msra.mxu0 0.0
    %464 = vmatprep.subr.mxu0 0.0
    %465 = vmatpush1.msra.mxu0 0.0
    %466 = vmatprep.subr.mxu0 0.0
    %467 = vmatpush1.msra.mxu0 0.0
    %468 = vmatprep.subr.mxu0 0.0
    %469 = vmatpush1.msra.mxu0 0.0
    %470 = vmatprep.subr.mxu0 0.0
    %471 = vmatpush1.msra.mxu0 0.0
    %472 = vmatprep.subr.mxu0 0.0
    %473 = vmatpush1.msra.mxu0 0.0
    %474 = vmatprep.subr.mxu0 0.0
    %475 = vmatpush1.msra.mxu0 0.0
    %476 = vmatprep.subr.mxu0 0.0
    %477 = vmatpush1.msra.mxu0 0.0
    %478 = vmatprep.subr.mxu0 0.0
    %479 = vmatpush1.msra.mxu0 0.0
    %480 = vmatprep.subr.mxu0 0.0
    %481 = vmatpush1.msra.mxu0 0.0
    %482 = vmatprep.subr.mxu0 0.0
    %483 = vmatpush1.msra.mxu0 0.0
    %484 = vmatprep.subr.mxu0 0.0
    %485 = vmatpush1.msra.mxu0 0.0
    %486 = vmatprep.subr.mxu0 0.0
    %487 = vmatpush1.msra.mxu0 0.0
    %488 = vmatprep.subr.mxu0 0.0
    %489 = vmatpush1.msra.mxu0 0.0
    %490 = vmatprep.subr.mxu0 0.0
    %491 = vmatpush1.msra.mxu0 0.0
    %492 = vmatprep.subr.mxu0 0.0
    %493 = vmatpush1.msra.mxu0 0.0
    %494 = vmatprep.subr.mxu0 0.0
    %495 = vmatpush1.msra.mxu0 0.0
    %496 = vmatprep.subr.mxu0 0.0
    %497 = vmatpush1.msra.mxu0 0.0
    %498 = vmatprep.subr.mxu0 0.0
    %499 = vmatpush1.msra.mxu0 0.0
    %500 = vmatprep.subr.mxu0 0.0
    %501 = vmatpush1.msra.mxu0 0.0
    %502 = vmatprep.subr.mxu0 0.0
    %503 = vmatpush1.msra.mxu0 0.0
    %504 = vmatprep.subr.mxu0 0.0
    %505 = vmatpush1.msra.mxu0 0.0
    %506 = vmatprep.subr.mxu0 0.0
    %507 = vmatpush1.msra.mxu0 0.0
    %508 = vmatprep.subr.mxu0 0.0
    %509 = vmatpush1.msra.mxu0 0.0
    %510 = vmatprep.mubr.f32.mxu0 0.0
    %511 = vmatmul.mubr.f32.gmra.mrb[0].mxu0 %v441
    %v512 = vpop.f32.mrb[0].mxu0
    %v513 = vadd.f32 0.0, %v512
    %v514 = vpop.f32.mrb[0].mxu0
    %515 = vmatprep.mubr.f32.mxu0 0.0
    %516 = vmatmul.mubr.f32.gmra.mrb[0].mxu0 %v444
    %v517 = vpop.f32.mrb[0].mxu0
    %v518 = vadd.f32 0.0, %v517
    %v519 = vpop.f32.mrb[0].mxu0
    %520 = vdwg.mxu0
    %521 = vrot.lane.b32.xlu0 %v113, 112
    %v522 = vpop.permute.xlu0 %521
    %523 = vrot.lane.b32.xlu0 %v118, 112
    %v524 = vpop.permute.xlu0 %523
    %525 = vrot.lane.b32.xlu0 %v113, 80
    %v526 = vpop.permute.xlu0 %525
    %527 = vrot.lane.b32.xlu0 %v118, 80
    %v528 = vpop.permute.xlu0 %527
    %v529 = vsel %vm127, %v522, 0
    %v531 = vsel %vm127, %v524, 0
    %v533 = vsel %vm127, %v526, 0
    %v535 = vsel %vm127, %v528, 0
    %537 = vmatprep.subr.mxu0 0.0
    %538 = vmatpush1.xpose.msra.mxu0 %v533
    %539 = vmatprep.subr.mxu0 0.0
    %540 = vmatpush1.xpose.msra.mxu0 %v535
    %541 = vmatprep.subr.mxu0 0.0
    %542 = vmatpush1.xpose.msra.mxu0 0.0
    %543 = vmatprep.subr.mxu0 0.0
    %544 = vmatpush1.xpose.msra.mxu0 0.0
    %545 = vmatprep.subr.mxu0 0.0
    %546 = vmatpush1.xpose.msra.mxu0 0.0
    %547 = vmatprep.subr.mxu0 0.0
    %548 = vmatpush1.xpose.msra.mxu0 0.0
    %549 = vmatprep.subr.mxu0 0.0
    %550 = vmatpush1.xpose.msra.mxu0 0.0
    %551 = vmatprep.subr.mxu0 0.0
    %552 = vmatpush1.xpose.msra.mxu0 0.0
    %553 = vmatprep.subr.mxu0 0.0
    %554 = vmatpush1.xpose.msra.mxu0 0.0
    %555 = vmatprep.subr.mxu0 0.0
    %556 = vmatpush1.xpose.msra.mxu0 0.0
    %557 = vmatprep.subr.mxu0 0.0
    %558 = vmatpush1.xpose.msra.mxu0 0.0
    %559 = vmatprep.subr.mxu0 0.0
    %560 = vmatpush1.xpose.msra.mxu0 0.0
    %561 = vmatprep.subr.mxu0 0.0
    %562 = vmatpush1.xpose.msra.mxu0 0.0
    %563 = vmatprep.subr.mxu0 0.0
    %564 = vmatpush1.xpose.msra.mxu0 0.0
    %565 = vmatprep.subr.mxu0 0.0
    %566 = vmatpush1.xpose.msra.mxu0 0.0
    %567 = vmatprep.subr.mxu0 0.0
    %568 = vmatpush1.xpose.msra.mxu0 0.0
    %569 = vmatprep.subr.mxu0 0.0
    %570 = vmatpush1.xpose.msra.mxu0 0.0
    %571 = vmatprep.subr.mxu0 0.0
    %572 = vmatpush1.xpose.msra.mxu0 0.0
    %573 = vmatprep.subr.mxu0 0.0
    %574 = vmatpush1.xpose.msra.mxu0 0.0
    %575 = vmatprep.subr.mxu0 0.0
    %576 = vmatpush1.xpose.msra.mxu0 0.0
    %577 = vmatprep.subr.mxu0 0.0
    %578 = vmatpush1.xpose.msra.mxu0 0.0
    %579 = vmatprep.subr.mxu0 0.0
    %580 = vmatpush1.xpose.msra.mxu0 0.0
    %581 = vmatprep.subr.mxu0 0.0
    %582 = vmatpush1.xpose.msra.mxu0 0.0
    %583 = vmatprep.subr.mxu0 0.0
    %584 = vmatpush1.xpose.msra.mxu0 0.0
    %585 = vmatprep.subr.mxu0 0.0
    %586 = vmatpush1.xpose.msra.mxu0 0.0
    %587 = vmatprep.subr.mxu0 0.0
    %588 = vmatpush1.xpose.msra.mxu0 0.0
    %589 = vmatprep.subr.mxu0 0.0
    %590 = vmatpush1.xpose.msra.mxu0 0.0
    %591 = vmatprep.subr.mxu0 0.0
    %592 = vmatpush1.xpose.msra.mxu0 0.0
    %593 = vmatprep.subr.mxu0 0.0
    %594 = vmatpush1.xpose.msra.mxu0 0.0
    %595 = vmatprep.subr.mxu0 0.0
    %596 = vmatpush1.xpose.msra.mxu0 0.0
    %597 = vmatprep.subr.mxu0 0.0
    %598 = vmatpush1.xpose.msra.mxu0 0.0
    %599 = vmatprep.subr.mxu0 0.0
    %600 = vmatpush1.xpose.msra.mxu0 0.0
    %601 = vmatprep.mubr.f32.mxu0 0.0
    %602 = vmatmul.mubr.f32.gmra.mrb[0].mxu0 %v529
    %v603 = vpop.f32.mrb[0].mxu0
    %v604 = vadd.f32 0.0, %v603
    %v605 = vpop.f32.mrb[0].mxu0
    %606 = vmatprep.mubr.f32.mxu0 0.0
    %607 = vmatmul.mubr.f32.gmra.mrb[0].mxu0 %v531
    %v608 = vpop.f32.mrb[0].mxu0
    %v609 = vadd.f32 0.0, %v608
    %v610 = vpop.f32.mrb[0].mxu0
    %611 = vdwg.mxu0
    %v612 = vsel %vm211, %v604, -inf
    %613 = vmax.xlane.f32.xlu0 %v612
    %v614 = vpop.xlane.xlu0 %613
    %v615 = vsel %vm211, %v609, -inf
    %616 = vmax.xlane.f32.xlu0 %v615
    %v617 = vpop.xlane.xlu0 %616
    %v618 = vsub.f32 %v604, %v614
    %v619 = vsub.f32 %v609, %v617
    %v620 = vmul.f32 %v618, 1.442695
    %v621 = vpow.pop %v620
    %v622 = vmul.f32 %v619, 1.442695
    %v623 = vpow.pop %v622
    %v624 = vsel %vm211, %v621, 0.0
    %625 = vadd.xlane.f32.xlu0 %v624
    %v626 = vpop.xlane.xlu0 %625
    %v627 = vsel %vm211, %v623, 0.0
    %628 = vadd.xlane.f32.xlu0 %v627
    %v629 = vpop.xlane.xlu0 %628
    %v630 = vrcp.pop %v626
    %v631 = vrcp.pop %v629
    %v632 = vmul.f32 %v621, %v630
    %v633 = vmul.f32 %v623, %v631
    %634 = vrot.lane.b32.xlu0 %v113, 48
    %v635 = vpop.permute.xlu0 %634
    %636 = vrot.lane.b32.xlu0 %v118, 48
    %v637 = vpop.permute.xlu0 %636
    %v641 = vsel %vm211, %v632, 0
    %v644 = vsel %vm211, %v633, 0
    %646 = vmatprep.subr.mxu0 0.0
    %647 = vmatpush1.msra.mxu0 %v635
    %648 = vmatprep.subr.mxu0 0.0
    %649 = vmatpush1.msra.mxu0 %v637
    %650 = vmatprep.subr.mxu0 0.0
    %651 = vmatpush1.msra.mxu0 0.0
    %652 = vmatprep.subr.mxu0 0.0
    %653 = vmatpush1.msra.mxu0 0.0
    %654 = vmatprep.subr.mxu0 0.0
    %655 = vmatpush1.msra.mxu0 0.0
    %656 = vmatprep.subr.mxu0 0.0
    %657 = vmatpush1.msra.mxu0 0.0
    %658 = vmatprep.subr.mxu0 0.0
    %659 = vmatpush1.msra.mxu0 0.0
    %660 = vmatprep.subr.mxu0 0.0
    %661 = vmatpush1.msra.mxu0 0.0
    %662 = vmatprep.subr.mxu0 0.0
    %663 = vmatpush1.msra.mxu0 0.0
    %664 = vmatprep.subr.mxu0 0.0
    %665 = vmatpush1.msra.mxu0 0.0
    %666 = vmatprep.subr.mxu0 0.0
    %667 = vmatpush1.msra.mxu0 0.0
    %668 = vmatprep.subr.mxu0 0.0
    %669 = vmatpush1.msra.mxu0 0.0
    %670 = vmatprep.subr.mxu0 0.0
    %671 = vmatpush1.msra.mxu0 0.0
    %672 = vmatprep.subr.mxu0 0.0
    %673 = vmatpush1.msra.mxu0 0.0
    %674 = vmatprep.subr.mxu0 0.0
    %675 = vmatpush1.msra.mxu0 0.0
    %676 = vmatprep.subr.mxu0 0.0
    %677 = vmatpush1.msra.mxu0 0.0
    %678 = vmatprep.subr.mxu0 0.0
    %679 = vmatpush1.msra.mxu0 0.0
    %680 = vmatprep.subr.mxu0 0.0
    %681 = vmatpush1.msra.mxu0 0.0
    %682 = vmatprep.subr.mxu0 0.0
    %683 = vmatpush1.msra.mxu0 0.0
    %684 = vmatprep.subr.mxu0 0.0
    %685 = vmatpush1.msra.mxu0 0.0
    %686 = vmatprep.subr.mxu0 0.0
    %687 = vmatpush1.msra.mxu0 0.0
    %688 = vmatprep.subr.mxu0 0.0
    %689 = vmatpush1.msra.mxu0 0.0
    %690 = vmatprep.subr.mxu0 0.0
    %691 = vmatpush1.msra.mxu0 0.0
    %692 = vmatprep.subr.mxu0 0.0
    %693 = vmatpush1.msra.mxu0 0.0
    %694 = vmatprep.subr.mxu0 0.0
    %695 = vmatpush1.msra.mxu0 0.0
    %696 = vmatprep.subr.mxu0 0.0
    %697 = vmatpush1.msra.mxu0 0.0
    %698 = vmatprep.subr.mxu0 0.0
    %699 = vmatpush1.msra.mxu0 0.0
    %700 = vmatprep.subr.mxu0 0.0
    %701 = vmatpush1.msra.mxu0 0.0
    %702 = vmatprep.subr.mxu0 0.0
    %703 = vmatpush1.msra.mxu0 0.0
    %704 = vmatprep.subr.mxu0 0.0
    %705 = vmatpush1.msra.mxu0 0.0
    %706 = vmatprep.subr.mxu0 0.0
    %707 = vmatpush1.msra.mxu0 0.0
    %708 = vmatprep.subr.mxu0 0.0
    %709 = vmatpush1.msra.mxu0 0.0
    %710 = vmatprep.mubr.f32.mxu0 0.0
    %711 = vmatmul.mubr.f32.gmra.mrb[0].mxu0 %v641
    %v712 = vpop.f32.mrb[0].mxu0
    %v713 = vadd.f32 0.0, %v712
    %v714 = vpop.f32.mrb[0].mxu0
    %715 = vmatprep.mubr.f32.mxu0 0.0
    %716 = vmatmul.mubr.f32.gmra.mrb[0].mxu0 %v644
    %v717 = vpop.f32.mrb[0].mxu0
    %v718 = vadd.f32 0.0, %v717
    %v719 = vpop.f32.mrb[0].mxu0
    %720 = vdwg.mxu0
    %721 = vrot.lane.b32.xlu0 %v113, 104
    %v722 = vpop.permute.xlu0 %721
    %723 = vrot.lane.b32.xlu0 %v118, 104
    %v724 = vpop.permute.xlu0 %723
    %725 = vrot.lane.b32.xlu0 %v113, 72
    %v726 = vpop.permute.xlu0 %725
    %727 = vrot.lane.b32.xlu0 %v118, 72
    %v728 = vpop.permute.xlu0 %727
    %v729 = vsel %vm127, %v722, 0
    %v731 = vsel %vm127, %v724, 0
    %v733 = vsel %vm127, %v726, 0
    %v735 = vsel %vm127, %v728, 0
    %737 = vmatprep.subr.mxu0 0.0
    %738 = vmatpush1.xpose.msra.mxu0 %v733
    %739 = vmatprep.subr.mxu0 0.0
    %740 = vmatpush1.xpose.msra.mxu0 %v735
    %741 = vmatprep.subr.mxu0 0.0
    %742 = vmatpush1.xpose.msra.mxu0 0.0
    %743 = vmatprep.subr.mxu0 0.0
    %744 = vmatpush1.xpose.msra.mxu0 0.0
    %745 = vmatprep.subr.mxu0 0.0
    %746 = vmatpush1.xpose.msra.mxu0 0.0
    %747 = vmatprep.subr.mxu0 0.0
    %748 = vmatpush1.xpose.msra.mxu0 0.0
    %749 = vmatprep.subr.mxu0 0.0
    %750 = vmatpush1.xpose.msra.mxu0 0.0
    %751 = vmatprep.subr.mxu0 0.0
    %752 = vmatpush1.xpose.msra.mxu0 0.0
    %753 = vmatprep.subr.mxu0 0.0
    %754 = vmatpush1.xpose.msra.mxu0 0.0
    %755 = vmatprep.subr.mxu0 0.0
    %756 = vmatpush1.xpose.msra.mxu0 0.0
    %757 = vmatprep.subr.mxu0 0.0
    %758 = vmatpush1.xpose.msra.mxu0 0.0
    %759 = vmatprep.subr.mxu0 0.0
    %760 = vmatpush1.xpose.msra.mxu0 0.0
    %761 = vmatprep.subr.mxu0 0.0
    %762 = vmatpush1.xpose.msra.mxu0 0.0
    %763 = vmatprep.subr.mxu0 0.0
    %764 = vmatpush1.xpose.msra.mxu0 0.0
    %765 = vmatprep.subr.mxu0 0.0
    %766 = vmatpush1.xpose.msra.mxu0 0.0
    %767 = vmatprep.subr.mxu0 0.0
    %768 = vmatpush1.xpose.msra.mxu0 0.0
    %769 = vmatprep.subr.mxu0 0.0
    %770 = vmatpush1.xpose.msra.mxu0 0.0
    %771 = vmatprep.subr.mxu0 0.0
    %772 = vmatpush1.xpose.msra.mxu0 0.0
    %773 = vmatprep.subr.mxu0 0.0
    %774 = vmatpush1.xpose.msra.mxu0 0.0
    %775 = vmatprep.subr.mxu0 0.0
    %776 = vmatpush1.xpose.msra.mxu0 0.0
    %777 = vmatprep.subr.mxu0 0.0
    %778 = vmatpush1.xpose.msra.mxu0 0.0
    %779 = vmatprep.subr.mxu0 0.0
    %780 = vmatpush1.xpose.msra.mxu0 0.0
    %781 = vmatprep.subr.mxu0 0.0
    %782 = vmatpush1.xpose.msra.mxu0 0.0
    %783 = vmatprep.subr.mxu0 0.0
    %784 = vmatpush1.xpose.msra.mxu0 0.0
    %785 = vmatprep.subr.mxu0 0.0
    %786 = vmatpush1.xpose.msra.mxu0 0.0
    %787 = vmatprep.subr.mxu0 0.0
    %788 = vmatpush1.xpose.msra.mxu0 0.0
    %789 = vmatprep.subr.mxu0 0.0
    %790 = vmatpush1.xpose.msra.mxu0 0.0
    %791 = vmatprep.subr.mxu0 0.0
    %792 = vmatpush1.xpose.msra.mxu0 0.0
    %793 = vmatprep.subr.mxu0 0.0
    %794 = vmatpush1.xpose.msra.mxu0 0.0
    %795 = vmatprep.subr.mxu0 0.0
    %796 = vmatpush1.xpose.msra.mxu0 0.0
    %797 = vmatprep.subr.mxu0 0.0
    %798 = vmatpush1.xpose.msra.mxu0 0.0
    %799 = vmatprep.subr.mxu0 0.0
    %800 = vmatpush1.xpose.msra.mxu0 0.0
    %801 = vmatprep.mubr.f32.mxu0 0.0
    %802 = vmatmul.mubr.f32.gmra.mrb[0].mxu0 %v729
    %v803 = vpop.f32.mrb[0].mxu0
    %v804 = vadd.f32 0.0, %v803
    %v805 = vpop.f32.mrb[0].mxu0
    %806 = vmatprep.mubr.f32.mxu0 0.0
    %807 = vmatmul.mubr.f32.gmra.mrb[0].mxu0 %v731
    %v808 = vpop.f32.mrb[0].mxu0
    %v809 = vadd.f32 0.0, %v808
    %v810 = vpop.f32.mrb[0].mxu0
    %811 = vdwg.mxu0
    %v812 = vsel %vm211, %v804, -inf
    %813 = vmax.xlane.f32.xlu0 %v812
    %v814 = vpop.xlane.xlu0 %813
    %v815 = vsel %vm211, %v809, -inf
    %816 = vmax.xlane.f32.xlu0 %v815
    %v817 = vpop.xlane.xlu0 %816
    %v818 = vsub.f32 %v804, %v814
    %v819 = vsub.f32 %v809, %v817
    %v820 = vmul.f32 %v818, 1.442695
    %v821 = vpow.pop %v820
    %v822 = vmul.f32 %v819, 1.442695
    %v823 = vpow.pop %v822
    %v824 = vsel %vm211, %v821, 0.0
    %825 = vadd.xlane.f32.xlu0 %v824
    %v826 = vpop.xlane.xlu0 %825
    %v827 = vsel %vm211, %v823, 0.0
    %828 = vadd.xlane.f32.xlu0 %v827
    %v829 = vpop.xlane.xlu0 %828
    %v830 = vrcp.pop %v826
    %v831 = vrcp.pop %v829
    %v832 = vmul.f32 %v821, %v830
    %v833 = vmul.f32 %v823, %v831
    %834 = vrot.lane.b32.xlu0 %v113, 40
    %v835 = vpop.permute.xlu0 %834
    %836 = vrot.lane.b32.xlu0 %v118, 40
    %v837 = vpop.permute.xlu0 %836
    %v841 = vsel %vm211, %v832, 0
    %v844 = vsel %vm211, %v833, 0
    %846 = vmatprep.subr.mxu0 0.0
    %847 = vmatpush1.msra.mxu0 %v835
    %848 = vmatprep.subr.mxu0 0.0
    %849 = vmatpush1.msra.mxu0 %v837
    %850 = vmatprep.subr.mxu0 0.0
    %851 = vmatpush1.msra.mxu0 0.0
    %852 = vmatprep.subr.mxu0 0.0
    %853 = vmatpush1.msra.mxu0 0.0
    %854 = vmatprep.subr.mxu0 0.0
    %855 = vmatpush1.msra.mxu0 0.0
    %856 = vmatprep.subr.mxu0 0.0
    %857 = vmatpush1.msra.mxu0 0.0
    %858 = vmatprep.subr.mxu0 0.0
    %859 = vmatpush1.msra.mxu0 0.0
    %860 = vmatprep.subr.mxu0 0.0
    %861 = vmatpush1.msra.mxu0 0.0
    %862 = vmatprep.subr.mxu0 0.0
    %863 = vmatpush1.msra.mxu0 0.0
    %864 = vmatprep.subr.mxu0 0.0
    %865 = vmatpush1.msra.mxu0 0.0
    %866 = vmatprep.subr.mxu0 0.0
    %867 = vmatpush1.msra.mxu0 0.0
    %868 = vmatprep.subr.mxu0 0.0
    %869 = vmatpush1.msra.mxu0 0.0
    %870 = vmatprep.subr.mxu0 0.0
    %871 = vmatpush1.msra.mxu0 0.0
    %872 = vmatprep.subr.mxu0 0.0
    %873 = vmatpush1.msra.mxu0 0.0
    %874 = vmatprep.subr.mxu0 0.0
    %875 = vmatpush1.msra.mxu0 0.0
    %876 = vmatprep.subr.mxu0 0.0
    %877 = vmatpush1.msra.mxu0 0.0
    %878 = vmatprep.subr.mxu0 0.0
    %879 = vmatpush1.msra.mxu0 0.0
    %880 = vmatprep.subr.mxu0 0.0
    %881 = vmatpush1.msra.mxu0 0.0
    %882 = vmatprep.subr.mxu0 0.0
    %883 = vmatpush1.msra.mxu0 0.0
    %884 = vmatprep.subr.mxu0 0.0
    %885 = vmatpush1.msra.mxu0 0.0
    %886 = vmatprep.subr.mxu0 0.0
    %887 = vmatpush1.msra.mxu0 0.0
    %888 = vmatprep.subr.mxu0 0.0
    %889 = vmatpush1.msra.mxu0 0.0
    %890 = vmatprep.subr.mxu0 0.0
    %891 = vmatpush1.msra.mxu0 0.0
    %892 = vmatprep.subr.mxu0 0.0
    %893 = vmatpush1.msra.mxu0 0.0
    %894 = vmatprep.subr.mxu0 0.0
    %895 = vmatpush1.msra.mxu0 0.0
    %896 = vmatprep.subr.mxu0 0.0
    %897 = vmatpush1.msra.mxu0 0.0
    %898 = vmatprep.subr.mxu0 0.0
    %899 = vmatpush1.msra.mxu0 0.0
    %900 = vmatprep.subr.mxu0 0.0
    %901 = vmatpush1.msra.mxu0 0.0
    %902 = vmatprep.subr.mxu0 0.0
    %903 = vmatpush1.msra.mxu0 0.0
    %904 = vmatprep.subr.mxu0 0.0
    %905 = vmatpush1.msra.mxu0 0.0
    %906 = vmatprep.subr.mxu0 0.0
    %907 = vmatpush1.msra.mxu0 0.0
    %908 = vmatprep.subr.mxu0 0.0
    %909 = vmatpush1.msra.mxu0 0.0
    %910 = vmatprep.mubr.f32.mxu0 0.0
    %911 = vmatmul.mubr.f32.gmra.mrb[0].mxu0 %v841
    %v912 = vpop.f32.mrb[0].mxu0
    %v913 = vadd.f32 0.0, %v912
    %v914 = vpop.f32.mrb[0].mxu0
    %915 = vmatprep.mubr.f32.mxu0 0.0
    %916 = vmatmul.mubr.f32.gmra.mrb[0].mxu0 %v844
    %v917 = vpop.f32.mrb[0].mxu0
    %v918 = vadd.f32 0.0, %v917
    %v919 = vpop.f32.mrb[0].mxu0
    %920 = vdwg.mxu0
    %923 = vrot.lane.b32.xlu0 %v513, 8
    %v924 = vpop.permute.xlu0 %923
    %925 = vrot.lane.b32.xlu0 %v518, 8
    %v926 = vpop.permute.xlu0 %925
    %931 = vrot.lane.b32.xlu0 %v713, 16
    %v932 = vpop.permute.xlu0 %931
    %933 = vrot.lane.b32.xlu0 %v718, 16
    %v934 = vpop.permute.xlu0 %933
    %939 = vrot.lane.b32.xlu0 %v913, 24
    %v940 = vpop.permute.xlu0 %939
    %941 = vrot.lane.b32.xlu0 %v918, 24
    %v942 = vpop.permute.xlu0 %941
    %v945 = vsel %vm127, %v313, %v924
    %v946 = vsel %vm127, %v318, %v926
    %v947 = vsel %vm211, %v945, %v932
    %v948 = vsel %vm211, %v946, %v934
    %vm949 = vcmask 195584
    %v950 = vsel %vm949, %v947, %v940
    %v951 = vsel %vm949, %v948, %v942
    %v952 = vmul.f32 %v950, %v27
    %v953 = vmul.f32 %v951, %v28
    %v954 = vld [vmem:[%s3] sm:$0xff]
    %v955 = vld [vmem:[%s3 + $0x8] sm:$0xff]
    %v956 = vld [vmem:[%s3 + $0x10] sm:$0xff]
    %v957 = vld [vmem:[%s3 + $0x18] sm:$0xff]
    %960 = vrot.lane.b32.xlu0 %v33, 32
    %v961 = vpop.permute.xlu0 %960
    %962 = vrot.lane.b32.xlu0 %v34, 32
    %v963 = vpop.permute.xlu0 %962
    %v967 = vsel %vm39, %v952, 0
    %v970 = vsel %vm39, %v953, 0
    %972 = vmatprep.subr.mxu0 0.0
    %973 = vmatpush1.msra.mxu0 %v954
    %974 = vmatprep.subr.mxu0 0.0
    %975 = vmatpush1.msra.mxu0 %v955
    %976 = vmatprep.subr.mxu0 0.0
    %977 = vmatpush1.msra.mxu0 %v956
    %978 = vmatprep.subr.mxu0 0.0
    %979 = vmatpush1.msra.mxu0 %v957
    %980 = vmatprep.subr.mxu0 0.0
    %981 = vmatpush1.msra.mxu0 0.0
    %982 = vmatprep.subr.mxu0 0.0
    %983 = vmatpush1.msra.mxu0 0.0
    %984 = vmatprep.subr.mxu0 0.0
    %985 = vmatpush1.msra.mxu0 0.0
    %986 = vmatprep.subr.mxu0 0.0
    %987 = vmatpush1.msra.mxu0 0.0
    %988 = vmatprep.subr.mxu0 0.0
    %989 = vmatpush1.msra.mxu0 0.0
    %990 = vmatprep.subr.mxu0 0.0
    %991 = vmatpush1.msra.mxu0 0.0
    %992 = vmatprep.subr.mxu0 0.0
    %993 = vmatpush1.msra.mxu0 0.0
    %994 = vmatprep.subr.mxu0 0.0
    %995 = vmatpush1.msra.mxu0 0.0
    %996 = vmatprep.subr.mxu0 0.0
    %997 = vmatpush1.msra.mxu0 0.0
    %998 = vmatprep.subr.mxu0 0.0
    %999 = vmatpush1.msra.mxu0 0.0
    %1000 = vmatprep.subr.mxu0 0.0
    %1001 = vmatpush1.msra.mxu0 0.0
    %1002 = vmatprep.subr.mxu0 0.0
    %1003 = vmatpush1.msra.mxu0 0.0
    %1004 = vmatprep.subr.mxu0 0.0
    %1005 = vmatpush1.msra.mxu0 0.0
    %1006 = vmatprep.subr.mxu0 0.0
    %1007 = vmatpush1.msra.mxu0 0.0
    %1008 = vmatprep.subr.mxu0 0.0
    %1009 = vmatpush1.msra.mxu0 0.0
    %1010 = vmatprep.subr.mxu0 0.0
    %1011 = vmatpush1.msra.mxu0 0.0
    %1012 = vmatprep.subr.mxu0 0.0
    %1013 = vmatpush1.msra.mxu0 0.0
    %1014 = vmatprep.subr.mxu0 0.0
    %1015 = vmatpush1.msra.mxu0 0.0
    %1016 = vmatprep.subr.mxu0 0.0
    %1017 = vmatpush1.msra.mxu0 0.0
    %1018 = vmatprep.subr.mxu0 0.0
    %1019 = vmatpush1.msra.mxu0 0.0
    %1020 = vmatprep.subr.mxu0 0.0
    %1021 = vmatpush1.msra.mxu0 0.0
    %1022 = vmatprep.subr.mxu0 0.0
    %1023 = vmatpush1.msra.mxu0 0.0
    %1024 = vmatprep.subr.mxu0 0.0
    %1025 = vmatpush1.msra.mxu0 0.0
    %1026 = vmatprep.subr.mxu0 0.0
    %1027 = vmatpush1.msra.mxu0 0.0
    %1028 = vmatprep.subr.mxu0 0.0
    %1029 = vmatpush1.msra.mxu0 0.0
    %1030 = vmatprep.subr.mxu0 0.0
    %1031 = vmatpush1.msra.mxu0 0.0
    %1032 = vmatprep.subr.mxu0 0.0
    %1033 = vmatpush1.msra.mxu0 0.0
    %1034 = vmatprep.subr.mxu0 0.0
    %1035 = vmatpush1.msra.mxu0 0.0
    %1036 = vmatprep.mubr.f32.mxu0 0.0
    %1037 = vmatmul.mubr.f32.gmra.mrb[0].mxu0 %v967
    %v1038 = vpop.f32.mrb[0].mxu0
    %v1039 = vadd.f32 %v961, %v1038
    %v1040 = vpop.f32.mrb[0].mxu0
    %1041 = vmatprep.mubr.f32.mxu0 0.0
    %1042 = vmatmul.mubr.f32.gmra.mrb[0].mxu0 %v970
    %v1043 = vpop.f32.mrb[0].mxu0
    %v1044 = vadd.f32 %v963, %v1043
    %v1045 = vpop.f32.mrb[0].mxu0
    %1046 = vdwg.mxu0
    %v1047 = vadd.f32 %v1039, %v24
    %v1048 = vadd.f32 %v1044, %v25
    %v1049 = vmax.f32 %v1047, 0.0
    %v1050 = vmax.f32 %v1048, 0.0
    %s1051 = scalar_lea.vmem %s4, 32
    %v1052 = vld [vmem:[%s1051] sm:$0xff]
    %v1053 = vld [vmem:[%s1051 + $0x8] sm:$0xff]
    %v1054 = vld [vmem:[%s1051 + $0x10] sm:$0xff]
    %v1055 = vld [vmem:[%s1051 + $0x18] sm:$0xff]
    %v1057 = vsel %vm39, %v1049, 0
    %v1060 = vsel %vm39, %v1050, 0
    %1062 = vmatprep.subr.mxu0 0.0
    %1063 = vmatpush1.msra.mxu0 %v1052
    %1064 = vmatprep.subr.mxu0 0.0
    %1065 = vmatpush1.msra.mxu0 %v1053
    %1066 = vmatprep.subr.mxu0 0.0
    %1067 = vmatpush1.msra.mxu0 %v1054
    %1068 = vmatprep.subr.mxu0 0.0
    %1069 = vmatpush1.msra.mxu0 %v1055
    %1070 = vmatprep.subr.mxu0 0.0
    %1071 = vmatpush1.msra.mxu0 0.0
    %1072 = vmatprep.subr.mxu0 0.0
    %1073 = vmatpush1.msra.mxu0 0.0
    %1074 = vmatprep.subr.mxu0 0.0
    %1075 = vmatpush1.msra.mxu0 0.0
    %1076 = vmatprep.subr.mxu0 0.0
    %1077 = vmatpush1.msra.mxu0 0.0
    %1078 = vmatprep.subr.mxu0 0.0
    %1079 = vmatpush1.msra.mxu0 0.0
    %1080 = vmatprep.subr.mxu0 0.0
    %1081 = vmatpush1.msra.mxu0 0.0
    %1082 = vmatprep.subr.mxu0 0.0
    %1083 = vmatpush1.msra.mxu0 0.0
    %1084 = vmatprep.subr.mxu0 0.0
    %1085 = vmatpush1.msra.mxu0 0.0
    %1086 = vmatprep.subr.mxu0 0.0
    %1087 = vmatpush1.msra.mxu0 0.0
    %1088 = vmatprep.subr.mxu0 0.0
    %1089 = vmatpush1.msra.mxu0 0.0
    %1090 = vmatprep.subr.mxu0 0.0
    %1091 = vmatpush1.msra.mxu0 0.0
    %1092 = vmatprep.subr.mxu0 0.0
    %1093 = vmatpush1.msra.mxu0 0.0
    %1094 = vmatprep.subr.mxu0 0.0
    %1095 = vmatpush1.msra.mxu0 0.0
    %1096 = vmatprep.subr.mxu0 0.0
    %1097 = vmatpush1.msra.mxu0 0.0
    %1098 = vmatprep.subr.mxu0 0.0
    %1099 = vmatpush1.msra.mxu0 0.0
    %1100 = vmatprep.subr.mxu0 0.0
    %1101 = vmatpush1.msra.mxu0 0.0
    %1102 = vmatprep.subr.mxu0 0.0
    %1103 = vmatpush1.msra.mxu0 0.0
    %1104 = vmatprep.subr.mxu0 0.0
    %1105 = vmatpush1.msra.mxu0 0.0
    %1106 = vmatprep.subr.mxu0 0.0
    %1107 = vmatpush1.msra.mxu0 0.0
    %1108 = vmatprep.subr.mxu0 0.0
    %1109 = vmatpush1.msra.mxu0 0.0
    %1110 = vmatprep.subr.mxu0 0.0
    %1111 = vmatpush1.msra.mxu0 0.0
    %1112 = vmatprep.subr.mxu0 0.0
    %1113 = vmatpush1.msra.mxu0 0.0
    %1114 = vmatprep.subr.mxu0 0.0
    %1115 = vmatpush1.msra.mxu0 0.0
    %1116 = vmatprep.subr.mxu0 0.0
    %1117 = vmatpush1.msra.mxu0 0.0
    %1118 = vmatprep.subr.mxu0 0.0
    %1119 = vmatpush1.msra.mxu0 0.0
    %1120 = vmatprep.subr.mxu0 0.0
    %1121 = vmatpush1.msra.mxu0 0.0
    %1122 = vmatprep.subr.mxu0 0.0
    %1123 = vmatpush1.msra.mxu0 0.0
    %1124 = vmatprep.subr.mxu0 0.0
    %1125 = vmatpush1.msra.mxu0 0.0
    %1126 = vmatprep.mubr.f32.mxu0 0.0
    %1127 = vmatmul.mubr.f32.gmra.mrb[0].mxu0 %v1057
    %v1128 = vpop.f32.mrb[0].mxu0
    %v1129 = vadd.f32 0.0, %v1128
    %v1130 = vpop.f32.mrb[0].mxu0
    %1131 = vmatprep.mubr.f32.mxu0 0.0
    %1132 = vmatmul.mubr.f32.gmra.mrb[0].mxu0 %v1060
    %v1133 = vpop.f32.mrb[0].mxu0
    %v1134 = vadd.f32 0.0, %v1133
    %v1135 = vpop.f32.mrb[0].mxu0
    %1136 = vdwg.mxu0
    %1137 = vmatprep.subr.mxu0 0.0
    %1138 = vmatpush1.msra.mxu0 %v29
    %1139 = vmatprep.subr.mxu0 0.0
    %1140 = vmatpush1.msra.mxu0 %v30
    %1141 = vmatprep.subr.mxu0 0.0
    %1142 = vmatpush1.msra.mxu0 %v31
    %1143 = vmatprep.subr.mxu0 0.0
    %1144 = vmatpush1.msra.mxu0 %v32
    %1145 = vmatprep.subr.mxu0 0.0
    %1146 = vmatpush1.msra.mxu0 0.0
    %1147 = vmatprep.subr.mxu0 0.0
    %1148 = vmatpush1.msra.mxu0 0.0
    %1149 = vmatprep.subr.mxu0 0.0
    %1150 = vmatpush1.msra.mxu0 0.0
    %1151 = vmatprep.subr.mxu0 0.0
    %1152 = vmatpush1.msra.mxu0 0.0
    %1153 = vmatprep.subr.mxu0 0.0
    %1154 = vmatpush1.msra.mxu0 0.0
    %1155 = vmatprep.subr.mxu0 0.0
    %1156 = vmatpush1.msra.mxu0 0.0
    %1157 = vmatprep.subr.mxu0 0.0
    %1158 = vmatpush1.msra.mxu0 0.0
    %1159 = vmatprep.subr.mxu0 0.0
    %1160 = vmatpush1.msra.mxu0 0.0
    %1161 = vmatprep.subr.mxu0 0.0
    %1162 = vmatpush1.msra.mxu0 0.0
    %1163 = vmatprep.subr.mxu0 0.0
    %1164 = vmatpush1.msra.mxu0 0.0
    %1165 = vmatprep.subr.mxu0 0.0
    %1166 = vmatpush1.msra.mxu0 0.0
    %1167 = vmatprep.subr.mxu0 0.0
    %1168 = vmatpush1.msra.mxu0 0.0
    %1169 = vmatprep.subr.mxu0 0.0
    %1170 = vmatpush1.msra.mxu0 0.0
    %1171 = vmatprep.subr.mxu0 0.0
    %1172 = vmatpush1.msra.mxu0 0.0
    %1173 = vmatprep.subr.mxu0 0.0
    %1174 = vmatpush1.msra.mxu0 0.0
    %1175 = vmatprep.subr.mxu0 0.0
    %1176 = vmatpush1.msra.mxu0 0.0
    %1177 = vmatprep.subr.mxu0 0.0
    %1178 = vmatpush1.msra.mxu0 0.0
    %1179 = vmatprep.subr.mxu0 0.0
    %1180 = vmatpush1.msra.mxu0 0.0
    %1181 = vmatprep.subr.mxu0 0.0
    %1182 = vmatpush1.msra.mxu0 0.0
    %1183 = vmatprep.subr.mxu0 0.0
    %1184 = vmatpush1.msra.mxu0 0.0
    %1185 = vmatprep.subr.mxu0 0.0
    %1186 = vmatpush1.msra.mxu0 0.0
    %1187 = vmatprep.subr.mxu0 0.0
    %1188 = vmatpush1.msra.mxu0 0.0
    %1189 = vmatprep.subr.mxu0 0.0
    %1190 = vmatpush1.msra.mxu0 0.0
    %1191 = vmatprep.subr.mxu0 0.0
    %1192 = vmatpush1.msra.mxu0 0.0
    %1193 = vmatprep.subr.mxu0 0.0
    %1194 = vmatpush1.msra.mxu0 0.0
    %1195 = vmatprep.subr.mxu0 0.0
    %1196 = vmatpush1.msra.mxu0 0.0
    %1197 = vmatprep.subr.mxu0 0.0
    %1198 = vmatpush1.msra.mxu0 0.0
    %1199 = vmatprep.subr.mxu0 0.0
    %1200 = vmatpush1.msra.mxu0 0.0
    %1201 = vmatprep.mubr.f32.mxu0 0.0
    %1202 = vmatmul.mubr.f32.gmra.mrb[0].mxu0 %v41
    %v1203 = vpop.f32.mrb[0].mxu0
    %v1204 = vadd.f32 %v1129, %v1203
    %v1205 = vpop.f32.mrb[0].mxu0
    %1206 = vmatprep.mubr.f32.mxu0 0.0
    %1207 = vmatmul.mubr.f32.gmra.mrb[0].mxu0 %v44
    %v1208 = vpop.f32.mrb[0].mxu0
    %v1209 = vadd.f32 %v1134, %v1208
    %v1210 = vpop.f32.mrb[0].mxu0
    %1211 = vdwg.mxu0
    %s1212 = scalar_lea.vmem %s1, 16
    %v1213 = vld [vmem:[%s1212] sm:$0xff]
    %v1214 = vld [vmem:[%s1212 + $0x8] sm:$0xff]
    %s1215 = scalar_lea.vmem %s2, 32
    %v1216 = vld [vmem:[%s1215] sm:$0xff]
    %v1217 = vld [vmem:[%s1215 + $0x8] sm:$0xff]
    %v1218 = vld [vmem:[%s1215 + $0x10] sm:$0xff]
    %v1219 = vld [vmem:[%s1215 + $0x18] sm:$0xff]
    %1220 = vmatprep.subr.mxu0 0.0
    %1221 = vmatpush1.msra.mxu0 %v1216
    %1222 = vmatprep.subr.mxu0 0.0
    %1223 = vmatpush1.msra.mxu0 %v1217
    %1224 = vmatprep.subr.mxu0 0.0
    %1225 = vmatpush1.msra.mxu0 %v1218
    %1226 = vmatprep.subr.mxu0 0.0
    %1227 = vmatpush1.msra.mxu0 %v1219
    %1228 = vmatprep.subr.mxu0 0.0
    %1229 = vmatpush1.msra.mxu0 0.0
    %1230 = vmatprep.subr.mxu0 0.0
    %1231 = vmatpush1.msra.mxu0 0.0
    %1232 = vmatprep.subr.mxu0 0.0
    %1233 = vmatpush1.msra.mxu0 0.0
    %1234 = vmatprep.subr.mxu0 0.0
    %1235 = vmatpush1.msra.mxu0 0.0
    %1236 = vmatprep.subr.mxu0 0.0
    %1237 = vmatpush1.msra.mxu0 0.0
    %1238 = vmatprep.subr.mxu0 0.0
    %1239 = vmatpush1.msra.mxu0 0.0
    %1240 = vmatprep.subr.mxu0 0.0
    %1241 = vmatpush1.msra.mxu0 0.0
    %1242 = vmatprep.subr.mxu0 0.0
    %1243 = vmatpush1.msra.mxu0 0.0
    %1244 = vmatprep.subr.mxu0 0.0
    %1245 = vmatpush1.msra.mxu0 0.0
    %1246 = vmatprep.subr.mxu0 0.0
    %1247 = vmatpush1.msra.mxu0 0.0
    %1248 = vmatprep.subr.mxu0 0.0
    %1249 = vmatpush1.msra.mxu0 0.0
    %1250 = vmatprep.subr.mxu0 0.0
    %1251 = vmatpush1.msra.mxu0 0.0
    %1252 = vmatprep.subr.mxu0 0.0
    %1253 = vmatpush1.msra.mxu0 0.0
    %1254 = vmatprep.subr.mxu0 0.0
    %1255 = vmatpush1.msra.mxu0 0.0
    %1256 = vmatprep.subr.mxu0 0.0
    %1257 = vmatpush1.msra.mxu0 0.0
    %1258 = vmatprep.subr.mxu0 0.0
    %1259 = vmatpush1.msra.mxu0 0.0
    %1260 = vmatprep.subr.mxu0 0.0
    %1261 = vmatpush1.msra.mxu0 0.0
    %1262 = vmatprep.subr.mxu0 0.0
    %1263 = vmatpush1.msra.mxu0 0.0
    %1264 = vmatprep.subr.mxu0 0.0
    %1265 = vmatpush1.msra.mxu0 0.0
    %1266 = vmatprep.subr.mxu0 0.0
    %1267 = vmatpush1.msra.mxu0 0.0
    %1268 = vmatprep.subr.mxu0 0.0
    %1269 = vmatpush1.msra.mxu0 0.0
    %1270 = vmatprep.subr.mxu0 0.0
    %1271 = vmatpush1.msra.mxu0 0.0
    %1272 = vmatprep.subr.mxu0 0.0
    %1273 = vmatpush1.msra.mxu0 0.0
    %1274 = vmatprep.subr.mxu0 0.0
    %1275 = vmatpush1.msra.mxu0 0.0
    %1276 = vmatprep.subr.mxu0 0.0
    %1277 = vmatpush1.msra.mxu0 0.0
    %1278 = vmatprep.subr.mxu0 0.0
    %1279 = vmatpush1.msra.mxu0 0.0
    %1280 = vmatprep.subr.mxu0 0.0
    %1281 = vmatpush1.msra.mxu0 0.0
    %1282 = vmatprep.subr.mxu0 0.0
    %1283 = vmatpush1.msra.mxu0 0.0
    %1284 = vmatprep.mubr.f32.mxu0 0.0
    %1285 = vmatmul.mubr.f32.gmra.mrb[0].mxu0 %v1057
    %v1286 = vpop.f32.mrb[0].mxu0
    %v1287 = vadd.f32 %v1213, %v1286
    %v1288 = vpop.f32.mrb[0].mxu0
    %1289 = vmatprep.mubr.f32.mxu0 0.0
    %1290 = vmatmul.mubr.f32.gmra.mrb[0].mxu0 %v1060
    %v1291 = vpop.f32.mrb[0].mxu0
    %v1292 = vadd.f32 %v1214, %v1291
    %v1293 = vpop.f32.mrb[0].mxu0
    %1294 = vdwg.mxu0
    %1297 = vrot.lane.b32.xlu0 %v1287, 96
    %v1298 = vpop.permute.xlu0 %1297
    %1299 = vrot.lane.b32.xlu0 %v1292, 96
    %v1300 = vpop.permute.xlu0 %1299
    %v1301 = vsel %vm127, %v1287, 0
    %v1303 = vsel %vm127, %v1292, 0
    %v1305 = vsel %vm127, %v1298, 0
    %v1307 = vsel %vm127, %v1300, 0
    %1309 = vmatprep.subr.mxu0 0.0
    %1310 = vmatpush1.xpose.msra.mxu0 %v1305
    %1311 = vmatprep.subr.mxu0 0.0
    %1312 = vmatpush1.xpose.msra.mxu0 %v1307
    %1313 = vmatprep.subr.mxu0 0.0
    %1314 = vmatpush1.xpose.msra.mxu0 0.0
    %1315 = vmatprep.subr.mxu0 0.0
    %1316 = vmatpush1.xpose.msra.mxu0 0.0
    %1317 = vmatprep.subr.mxu0 0.0
    %1318 = vmatpush1.xpose.msra.mxu0 0.0
    %1319 = vmatprep.subr.mxu0 0.0
    %1320 = vmatpush1.xpose.msra.mxu0 0.0
    %1321 = vmatprep.subr.mxu0 0.0
    %1322 = vmatpush1.xpose.msra.mxu0 0.0
    %1323 = vmatprep.subr.mxu0 0.0
    %1324 = vmatpush1.xpose.msra.mxu0 0.0
    %1325 = vmatprep.subr.mxu0 0.0
    %1326 = vmatpush1.xpose.msra.mxu0 0.0
    %1327 = vmatprep.subr.mxu0 0.0
    %1328 = vmatpush1.xpose.msra.mxu0 0.0
    %1329 = vmatprep.subr.mxu0 0.0
    %1330 = vmatpush1.xpose.msra.mxu0 0.0
    %1331 = vmatprep.subr.mxu0 0.0
    %1332 = vmatpush1.xpose.msra.mxu0 0.0
    %1333 = vmatprep.subr.mxu0 0.0
    %1334 = vmatpush1.xpose.msra.mxu0 0.0
    %1335 = vmatprep.subr.mxu0 0.0
    %1336 = vmatpush1.xpose.msra.mxu0 0.0
    %1337 = vmatprep.subr.mxu0 0.0
    %1338 = vmatpush1.xpose.msra.mxu0 0.0
    %1339 = vmatprep.subr.mxu0 0.0
    %1340 = vmatpush1.xpose.msra.mxu0 0.0
    %1341 = vmatprep.subr.mxu0 0.0
    %1342 = vmatpush1.xpose.msra.mxu0 0.0
    %1343 = vmatprep.subr.mxu0 0.0
    %1344 = vmatpush1.xpose.msra.mxu0 0.0
    %1345 = vmatprep.subr.mxu0 0.0
    %1346 = vmatpush1.xpose.msra.mxu0 0.0
    %1347 = vmatprep.subr.mxu0 0.0
    %1348 = vmatpush1.xpose.msra.mxu0 0.0
    %1349 = vmatprep.subr.mxu0 0.0
    %1350 = vmatpush1.xpose.msra.mxu0 0.0
    %1351 = vmatprep.subr.mxu0 0.0
    %1352 = vmatpush1.xpose.msra.mxu0 0.0
    %1353 = vmatprep.subr.mxu0 0.0
    %1354 = vmatpush1.xpose.msra.mxu0 0.0
    %1355 = vmatprep.subr.mxu0 0.0
    %1356 = vmatpush1.xpose.msra.mxu0 0.0
    %1357 = vmatprep.subr.mxu0 0.0
    %1358 = vmatpush1.xpose.msra.mxu0 0.0
    %1359 = vmatprep.subr.mxu0 0.0
    %1360 = vmatpush1.xpose.msra.mxu0 0.0
    %1361 = vmatprep.subr.mxu0 0.0
    %1362 = vmatpush1.xpose.msra.mxu0 0.0
    %1363 = vmatprep.subr.mxu0 0.0
    %1364 = vmatpush1.xpose.msra.mxu0 0.0
    %1365 = vmatprep.subr.mxu0 0.0
    %1366 = vmatpush1.xpose.msra.mxu0 0.0
    %1367 = vmatprep.subr.mxu0 0.0
    %1368 = vmatpush1.xpose.msra.mxu0 0.0
    %1369 = vmatprep.subr.mxu0 0.0
    %1370 = vmatpush1.xpose.msra.mxu0 0.0
    %1371 = vmatprep.subr.mxu0 0.0
    %1372 = vmatpush1.xpose.msra.mxu0 0.0
    %1373 = vmatprep.mubr.f32.mxu0 0.0
    %1374 = vmatmul.mubr.f32.gmra.mrb[0].mxu0 %v1301
    %v1375 = vpop.f32.mrb[0].mxu0
    %v1376 = vadd.f32 0.0, %v1375
    %v1377 = vpop.f32.mrb[0].mxu0
    %1378 = vmatprep.mubr.f32.mxu0 0.0
    %1379 = vmatmul.mubr.f32.gmra.mrb[0].mxu0 %v1303
    %v1380 = vpop.f32.mrb[0].mxu0
    %v1381 = vadd.f32 0.0, %v1380
    %v1382 = vpop.f32.mrb[0].mxu0
    %1383 = vdwg.mxu0
    %v1384 = vsel %vm211, %v1376, -inf
    %1385 = vmax.xlane.f32.xlu0 %v1384
    %v1386 = vpop.xlane.xlu0 %1385
    %v1387 = vsel %vm211, %v1381, -inf
    %1388 = vmax.xlane.f32.xlu0 %v1387
    %v1389 = vpop.xlane.xlu0 %1388
    %v1390 = vsub.f32 %v1376, %v1386
    %v1391 = vsub.f32 %v1381, %v1389
    %v1392 = vmul.f32 %v1390, 1.442695
    %v1393 = vpow.pop %v1392
    %v1394 = vmul.f32 %v1391, 1.442695
    %v1395 = vpow.pop %v1394
    %v1396 = vsel %vm211, %v1393, 0.0
    %1397 = vadd.xlane.f32.xlu0 %v1396
    %v1398 = vpop.xlane.xlu0 %1397
    %v1399 = vsel %vm211, %v1395, 0.0
    %1400 = vadd.xlane.f32.xlu0 %v1399
    %v1401 = vpop.xlane.xlu0 %1400
    %v1402 = vrcp.pop %v1398
    %v1403 = vrcp.pop %v1401
    %v1404 = vmul.f32 %v1393, %v1402
    %v1405 = vmul.f32 %v1395, %v1403
    %1406 = vrot.lane.b32.xlu0 %v1287, 64
    %v1407 = vpop.permute.xlu0 %1406
    %1408 = vrot.lane.b32.xlu0 %v1292, 64
    %v1409 = vpop.permute.xlu0 %1408
    %v1413 = vsel %vm211, %v1404, 0
    %v1416 = vsel %vm211, %v1405, 0
    %1418 = vmatprep.subr.mxu0 0.0
    %1419 = vmatpush1.msra.mxu0 %v1407
    %1420 = vmatprep.subr.mxu0 0.0
    %1421 = vmatpush1.msra.mxu0 %v1409
    %1422 = vmatprep.subr.mxu0 0.0
    %1423 = vmatpush1.msra.mxu0 0.0
    %1424 = vmatprep.subr.mxu0 0.0
    %1425 = vmatpush1.msra.mxu0 0.0
    %1426 = vmatprep.subr.mxu0 0.0
    %1427 = vmatpush1.msra.mxu0 0.0
    %1428 = vmatprep.subr.mxu0 0.0
    %1429 = vmatpush1.msra.mxu0 0.0
    %1430 = vmatprep.subr.mxu0 0.0
    %1431 = vmatpush1.msra.mxu0 0.0
    %1432 = vmatprep.subr.mxu0 0.0
    %1433 = vmatpush1.msra.mxu0 0.0
    %1434 = vmatprep.subr.mxu0 0.0
    %1435 = vmatpush1.msra.mxu0 0.0
    %1436 = vmatprep.subr.mxu0 0.0
    %1437 = vmatpush1.msra.mxu0 0.0
    %1438 = vmatprep.subr.mxu0 0.0
    %1439 = vmatpush1.msra.mxu0 0.0
    %1440 = vmatprep.subr.mxu0 0.0
    %1441 = vmatpush1.msra.mxu0 0.0
    %1442 = vmatprep.subr.mxu0 0.0
    %1443 = vmatpush1.msra.mxu0 0.0
    %1444 = vmatprep.subr.mxu0 0.0
    %1445 = vmatpush1.msra.mxu0 0.0
    %1446 = vmatprep.subr.mxu0 0.0
    %1447 = vmatpush1.msra.mxu0 0.0
    %1448 = vmatprep.subr.mxu0 0.0
    %1449 = vmatpush1.msra.mxu0 0.0
    %1450 = vmatprep.subr.mxu0 0.0
    %1451 = vmatpush1.msra.mxu0 0.0
    %1452 = vmatprep.subr.mxu0 0.0
    %1453 = vmatpush1.msra.mxu0 0.0
    %1454 = vmatprep.subr.mxu0 0.0
    %1455 = vmatpush1.msra.mxu0 0.0
    %1456 = vmatprep.subr.mxu0 0.0
    %1457 = vmatpush1.msra.mxu0 0.0
    %1458 = vmatprep.subr.mxu0 0.0
    %1459 = vmatpush1.msra.mxu0 0.0
    %1460 = vmatprep.subr.mxu0 0.0
    %1461 = vmatpush1.msra.mxu0 0.0
    %1462 = vmatprep.subr.mxu0 0.0
    %1463 = vmatpush1.msra.mxu0 0.0
    %1464 = vmatprep.subr.mxu0 0.0
    %1465 = vmatpush1.msra.mxu0 0.0
    %1466 = vmatprep.subr.mxu0 0.0
    %1467 = vmatpush1.msra.mxu0 0.0
    %1468 = vmatprep.subr.mxu0 0.0
    %1469 = vmatpush1.msra.mxu0 0.0
    %1470 = vmatprep.subr.mxu0 0.0
    %1471 = vmatpush1.msra.mxu0 0.0
    %1472 = vmatprep.subr.mxu0 0.0
    %1473 = vmatpush1.msra.mxu0 0.0
    %1474 = vmatprep.subr.mxu0 0.0
    %1475 = vmatpush1.msra.mxu0 0.0
    %1476 = vmatprep.subr.mxu0 0.0
    %1477 = vmatpush1.msra.mxu0 0.0
    %1478 = vmatprep.subr.mxu0 0.0
    %1479 = vmatpush1.msra.mxu0 0.0
    %1480 = vmatprep.subr.mxu0 0.0
    %1481 = vmatpush1.msra.mxu0 0.0
    %1482 = vmatprep.mubr.f32.mxu0 0.0
    %1483 = vmatmul.mubr.f32.gmra.mrb[0].mxu0 %v1413
    %v1484 = vpop.f32.mrb[0].mxu0
    %v1485 = vadd.f32 0.0, %v1484
    %v1486 = vpop.f32.mrb[0].mxu0
    %1487 = vmatprep.mubr.f32.mxu0 0.0
    %1488 = vmatmul.mubr.f32.gmra.mrb[0].mxu0 %v1416
    %v1489 = vpop.f32.mrb[0].mxu0
    %v1490 = vadd.f32 0.0, %v1489
    %v1491 = vpop.f32.mrb[0].mxu0
    %1492 = vdwg.mxu0
    %1493 = vrot.lane.b32.xlu0 %v1287, 120
    %v1494 = vpop.permute.xlu0 %1493
    %1495 = vrot.lane.b32.xlu0 %v1292, 120
    %v1496 = vpop.permute.xlu0 %1495
    %1497 = vrot.lane.b32.xlu0 %v1287, 88
    %v1498 = vpop.permute.xlu0 %1497
    %1499 = vrot.lane.b32.xlu0 %v1292, 88
    %v1500 = vpop.permute.xlu0 %1499
    %v1501 = vsel %vm127, %v1494, 0
    %v1503 = vsel %vm127, %v1496, 0
    %v1505 = vsel %vm127, %v1498, 0
    %v1507 = vsel %vm127, %v1500, 0
    %1509 = vmatprep.subr.mxu0 0.0
    %1510 = vmatpush1.xpose.msra.mxu0 %v1505
    %1511 = vmatprep.subr.mxu0 0.0
    %1512 = vmatpush1.xpose.msra.mxu0 %v1507
    %1513 = vmatprep.subr.mxu0 0.0
    %1514 = vmatpush1.xpose.msra.mxu0 0.0
    %1515 = vmatprep.subr.mxu0 0.0
    %1516 = vmatpush1.xpose.msra.mxu0 0.0
    %1517 = vmatprep.subr.mxu0 0.0
    %1518 = vmatpush1.xpose.msra.mxu0 0.0
    %1519 = vmatprep.subr.mxu0 0.0
    %1520 = vmatpush1.xpose.msra.mxu0 0.0
    %1521 = vmatprep.subr.mxu0 0.0
    %1522 = vmatpush1.xpose.msra.mxu0 0.0
    %1523 = vmatprep.subr.mxu0 0.0
    %1524 = vmatpush1.xpose.msra.mxu0 0.0
    %1525 = vmatprep.subr.mxu0 0.0
    %1526 = vmatpush1.xpose.msra.mxu0 0.0
    %1527 = vmatprep.subr.mxu0 0.0
    %1528 = vmatpush1.xpose.msra.mxu0 0.0
    %1529 = vmatprep.subr.mxu0 0.0
    %1530 = vmatpush1.xpose.msra.mxu0 0.0
    %1531 = vmatprep.subr.mxu0 0.0
    %1532 = vmatpush1.xpose.msra.mxu0 0.0
    %1533 = vmatprep.subr.mxu0 0.0
    %1534 = vmatpush1.xpose.msra.mxu0 0.0
    %1535 = vmatprep.subr.mxu0 0.0
    %1536 = vmatpush1.xpose.msra.mxu0 0.0
    %1537 = vmatprep.subr.mxu0 0.0
    %1538 = vmatpush1.xpose.msra.mxu0 0.0
    %1539 = vmatprep.subr.mxu0 0.0
    %1540 = vmatpush1.xpose.msra.mxu0 0.0
    %1541 = vmatprep.subr.mxu0 0.0
    %1542 = vmatpush1.xpose.msra.mxu0 0.0
    %1543 = vmatprep.subr.mxu0 0.0
    %1544 = vmatpush1.xpose.msra.mxu0 0.0
    %1545 = vmatprep.subr.mxu0 0.0
    %1546 = vmatpush1.xpose.msra.mxu0 0.0
    %1547 = vmatprep.subr.mxu0 0.0
    %1548 = vmatpush1.xpose.msra.mxu0 0.0
    %1549 = vmatprep.subr.mxu0 0.0
    %1550 = vmatpush1.xpose.msra.mxu0 0.0
    %1551 = vmatprep.subr.mxu0 0.0
    %1552 = vmatpush1.xpose.msra.mxu0 0.0
    %1553 = vmatprep.subr.mxu0 0.0
    %1554 = vmatpush1.xpose.msra.mxu0 0.0
    %1555 = vmatprep.subr.mxu0 0.0
    %1556 = vmatpush1.xpose.msra.mxu0 0.0
    %1557 = vmatprep.subr.mxu0 0.0
    %1558 = vmatpush1.xpose.msra.mxu0 0.0
    %1559 = vmatprep.subr.mxu0 0.0
    %1560 = vmatpush1.xpose.msra.mxu0 0.0
    %1561 = vmatprep.subr.mxu0 0.0
    %1562 = vmatpush1.xpose.msra.mxu0 0.0
    %1563 = vmatprep.subr.mxu0 0.0
    %1564 = vmatpush1.xpose.msra.mxu0 0.0
    %1565 = vmatprep.subr.mxu0 0.0
    %1566 = vmatpush1.xpose.msra.mxu0 0.0
    %1567 = vmatprep.subr.mxu0 0.0
    %1568 = vmatpush1.xpose.msra.mxu0 0.0
    %1569 = vmatprep.subr.mxu0 0.0
    %1570 = vmatpush1.xpose.msra.mxu0 0.0
    %1571 = vmatprep.subr.mxu0 0.0
    %1572 = vmatpush1.xpose.msra.mxu0 0.0
    %1573 = vmatprep.mubr.f32.mxu0 0.0
    %1574 = vmatmul.mubr.f32.gmra.mrb[0].mxu0 %v1501
    %v1575 = vpop.f32.mrb[0].mxu0
    %v1576 = vadd.f32 0.0, %v1575
    %v1577 = vpop.f32.mrb[0].mxu0
    %1578 = vmatprep.mubr.f32.mxu0 0.0
    %1579 = vmatmul.mubr.f32.gmra.mrb[0].mxu0 %v1503
    %v1580 = vpop.f32.mrb[0].mxu0
    %v1581 = vadd.f32 0.0, %v1580
    %v1582 = vpop.f32.mrb[0].mxu0
    %1583 = vdwg.mxu0
    %v1584 = vsel %vm211, %v1576, -inf
    %1585 = vmax.xlane.f32.xlu0 %v1584
    %v1586 = vpop.xlane.xlu0 %1585
    %v1587 = vsel %vm211, %v1581, -inf
    %1588 = vmax.xlane.f32.xlu0 %v1587
    %v1589 = vpop.xlane.xlu0 %1588
    %v1590 = vsub.f32 %v1576, %v1586
    %v1591 = vsub.f32 %v1581, %v1589
    %v1592 = vmul.f32 %v1590, 1.442695
    %v1593 = vpow.pop %v1592
    %v1594 = vmul.f32 %v1591, 1.442695
    %v1595 = vpow.pop %v1594
    %v1596 = vsel %vm211, %v1593, 0.0
    %1597 = vadd.xlane.f32.xlu0 %v1596
    %v1598 = vpop.xlane.xlu0 %1597
    %v1599 = vsel %vm211, %v1595, 0.0
    %1600 = vadd.xlane.f32.xlu0 %v1599
    %v1601 = vpop.xlane.xlu0 %1600
    %v1602 = vrcp.pop %v1598
    %v1603 = vrcp.pop %v1601
    %v1604 = vmul.f32 %v1593, %v1602
    %v1605 = vmul.f32 %v1595, %v1603
    %1606 = vrot.lane.b32.xlu0 %v1287, 56
    %v1607 = vpop.permute.xlu0 %1606
    %1608 = vrot.lane.b32.xlu0 %v1292, 56
    %v1609 = vpop.permute.xlu0 %1608
    %v1613 = vsel %vm211, %v1604, 0
    %v1616 = vsel %vm211, %v1605, 0
    %1618 = vmatprep.subr.mxu0 0.0
    %1619 = vmatpush1.msra.mxu0 %v1607
    %1620 = vmatprep.subr.mxu0 0.0
    %1621 = vmatpush1.msra.mxu0 %v1609
    %1622 = vmatprep.subr.mxu0 0.0
    %1623 = vmatpush1.msra.mxu0 0.0
    %1624 = vmatprep.subr.mxu0 0.0
    %1625 = vmatpush1.msra.mxu0 0.0
    %1626 = vmatprep.subr.mxu0 0.0
    %1627 = vmatpush1.msra.mxu0 0.0
    %1628 = vmatprep.subr.mxu0 0.0
    %1629 = vmatpush1.msra.mxu0 0.0
    %1630 = vmatprep.subr.mxu0 0.0
    %1631 = vmatpush1.msra.mxu0 0.0
    %1632 = vmatprep.subr.mxu0 0.0
    %1633 = vmatpush1.msra.mxu0 0.0
    %1634 = vmatprep.subr.mxu0 0.0
    %1635 = vmatpush1.msra.mxu0 0.0
    %1636 = vmatprep.subr.mxu0 0.0
    %1637 = vmatpush1.msra.mxu0 0.0
    %1638 = vmatprep.subr.mxu0 0.0
    %1639 = vmatpush1.msra.mxu0 0.0
    %1640 = vmatprep.subr.mxu0 0.0
    %1641 = vmatpush1.msra.mxu0 0.0
    %1642 = vmatprep.subr.mxu0 0.0
    %1643 = vmatpush1.msra.mxu0 0.0
    %1644 = vmatprep.subr.mxu0 0.0
    %1645 = vmatpush1.msra.mxu0 0.0
    %1646 = vmatprep.subr.mxu0 0.0
    %1647 = vmatpush1.msra.mxu0 0.0
    %1648 = vmatprep.subr.mxu0 0.0
    %1649 = vmatpush1.msra.mxu0 0.0
    %1650 = vmatprep.subr.mxu0 0.0
    %1651 = vmatpush1.msra.mxu0 0.0
    %1652 = vmatprep.subr.mxu0 0.0
    %1653 = vmatpush1.msra.mxu0 0.0
    %1654 = vmatprep.subr.mxu0 0.0
    %1655 = vmatpush1.msra.mxu0 0.0
    %1656 = vmatprep.subr.mxu0 0.0
    %1657 = vmatpush1.msra.mxu0 0.0
    %1658 = vmatprep.subr.mxu0 0.0
    %1659 = vmatpush1.msra.mxu0 0.0
    %1660 = vmatprep.subr.mxu0 0.0
    %1661 = vmatpush1.msra.mxu0 0.0
    %1662 = vmatprep.subr.mxu0 0.0
    %1663 = vmatpush1.msra.mxu0 0.0
    %1664 = vmatprep.subr.mxu0 0.0
    %1665 = vmatpush1.msra.mxu0 0.0
    %1666 = vmatprep.subr.mxu0 0.0
    %1667 = vmatpush1.msra.mxu0 0.0
    %1668 = vmatprep.subr.mxu0 0.0
    %1669 = vmatpush1.msra.mxu0 0.0
    %1670 = vmatprep.subr.mxu0 0.0
    %1671 = vmatpush1.msra.mxu0 0.0
    %1672 = vmatprep.subr.mxu0 0.0
    %1673 = vmatpush1.msra.mxu0 0.0
    %1674 = vmatprep.subr.mxu0 0.0
    %1675 = vmatpush1.msra.mxu0 0.0
    %1676 = vmatprep.subr.mxu0 0.0
    %1677 = vmatpush1.msra.mxu0 0.0
    %1678 = vmatprep.subr.mxu0 0.0
    %1679 = vmatpush1.msra.mxu0 0.0
    %1680 = vmatprep.subr.mxu0 0.0
    %1681 = vmatpush1.msra.mxu0 0.0
    %1682 = vmatprep.mubr.f32.mxu0 0.0
    %1683 = vmatmul.mubr.f32.gmra.mrb[0].mxu0 %v1613
    %v1684 = vpop.f32.mrb[0].mxu0
    %v1685 = vadd.f32 0.0, %v1684
    %v1686 = vpop.f32.mrb[0].mxu0
    %1687 = vmatprep.mubr.f32.mxu0 0.0
    %1688 = vmatmul.mubr.f32.gmra.mrb[0].mxu0 %v1616
    %v1689 = vpop.f32.mrb[0].mxu0
    %v1690 = vadd.f32 0.0, %v1689
    %v1691 = vpop.f32.mrb[0].mxu0
    %1692 = vdwg.mxu0
    %1693 = vrot.lane.b32.xlu0 %v1287, 112
    %v1694 = vpop.permute.xlu0 %1693
    %1695 = vrot.lane.b32.xlu0 %v1292, 112
    %v1696 = vpop.permute.xlu0 %1695
    %1697 = vrot.lane.b32.xlu0 %v1287, 80
    %v1698 = vpop.permute.xlu0 %1697
    %1699 = vrot.lane.b32.xlu0 %v1292, 80
    %v1700 = vpop.permute.xlu0 %1699
    %v1701 = vsel %vm127, %v1694, 0
    %v1703 = vsel %vm127, %v1696, 0
    %v1705 = vsel %vm127, %v1698, 0
    %v1707 = vsel %vm127, %v1700, 0
    %1709 = vmatprep.subr.mxu0 0.0
    %1710 = vmatpush1.xpose.msra.mxu0 %v1705
    %1711 = vmatprep.subr.mxu0 0.0
    %1712 = vmatpush1.xpose.msra.mxu0 %v1707
    %1713 = vmatprep.subr.mxu0 0.0
    %1714 = vmatpush1.xpose.msra.mxu0 0.0
    %1715 = vmatprep.subr.mxu0 0.0
    %1716 = vmatpush1.xpose.msra.mxu0 0.0
    %1717 = vmatprep.subr.mxu0 0.0
    %1718 = vmatpush1.xpose.msra.mxu0 0.0
    %1719 = vmatprep.subr.mxu0 0.0
    %1720 = vmatpush1.xpose.msra.mxu0 0.0
    %1721 = vmatprep.subr.mxu0 0.0
    %1722 = vmatpush1.xpose.msra.mxu0 0.0
    %1723 = vmatprep.subr.mxu0 0.0
    %1724 = vmatpush1.xpose.msra.mxu0 0.0
    %1725 = vmatprep.subr.mxu0 0.0
    %1726 = vmatpush1.xpose.msra.mxu0 0.0
    %1727 = vmatprep.subr.mxu0 0.0
    %1728 = vmatpush1.xpose.msra.mxu0 0.0
    %1729 = vmatprep.subr.mxu0 0.0
    %1730 = vmatpush1.xpose.msra.mxu0 0.0
    %1731 = vmatprep.subr.mxu0 0.0
    %1732 = vmatpush1.xpose.msra.mxu0 0.0
    %1733 = vmatprep.subr.mxu0 0.0
    %1734 = vmatpush1.xpose.msra.mxu0 0.0
    %1735 = vmatprep.subr.mxu0 0.0
    %1736 = vmatpush1.xpose.msra.mxu0 0.0
    %1737 = vmatprep.subr.mxu0 0.0
    %1738 = vmatpush1.xpose.msra.mxu0 0.0
    %1739 = vmatprep.subr.mxu0 0.0
    %1740 = vmatpush1.xpose.msra.mxu0 0.0
    %1741 = vmatprep.subr.mxu0 0.0
    %1742 = vmatpush1.xpose.msra.mxu0 0.0
    %1743 = vmatprep.subr.mxu0 0.0
    %1744 = vmatpush1.xpose.msra.mxu0 0.0
    %1745 = vmatprep.subr.mxu0 0.0
    %1746 = vmatpush1.xpose.msra.mxu0 0.0
    %1747 = vmatprep.subr.mxu0 0.0
    %1748 = vmatpush1.xpose.msra.mxu0 0.0
    %1749 = vmatprep.subr.mxu0 0.0
    %1750 = vmatpush1.xpose.msra.mxu0 0.0
    %1751 = vmatprep.subr.mxu0 0.0
    %1752 = vmatpush1.xpose.msra.mxu0 0.0
    %1753 = vmatprep.subr.mxu0 0.0
    %1754 = vmatpush1.xpose.msra.mxu0 0.0
    %1755 = vmatprep.subr.mxu0 0.0
    %1756 = vmatpush1.xpose.msra.mxu0 0.0
    %1757 = vmatprep.subr.mxu0 0.0
    %1758 = vmatpush1.xpose.msra.mxu0 0.0
    %1759 = vmatprep.subr.mxu0 0.0
    %1760 = vmatpush1.xpose.msra.mxu0 0.0
    %1761 = vmatprep.subr.mxu0 0.0
    %1762 = vmatpush1.xpose.msra.mxu0 0.0
    %1763 = vmatprep.subr.mxu0 0.0
    %1764 = vmatpush1.xpose.msra.mxu0 0.0
    %1765 = vmatprep.subr.mxu0 0.0
    %1766 = vmatpush1.xpose.msra.mxu0 0.0
    %1767 = vmatprep.subr.mxu0 0.0
    %1768 = vmatpush1.xpose.msra.mxu0 0.0
    %1769 = vmatprep.subr.mxu0 0.0
    %1770 = vmatpush1.xpose.msra.mxu0 0.0
    %1771 = vmatprep.subr.mxu0 0.0
    %1772 = vmatpush1.xpose.msra.mxu0 0.0
    %1773 = vmatprep.mubr.f32.mxu0 0.0
    %1774 = vmatmul.mubr.f32.gmra.mrb[0].mxu0 %v1701
    %v1775 = vpop.f32.mrb[0].mxu0
    %v1776 = vadd.f32 0.0, %v1775
    %v1777 = vpop.f32.mrb[0].mxu0
    %1778 = vmatprep.mubr.f32.mxu0 0.0
    %1779 = vmatmul.mubr.f32.gmra.mrb[0].mxu0 %v1703
    %v1780 = vpop.f32.mrb[0].mxu0
    %v1781 = vadd.f32 0.0, %v1780
    %v1782 = vpop.f32.mrb[0].mxu0
    %1783 = vdwg.mxu0
    %v1784 = vsel %vm211, %v1776, -inf
    %1785 = vmax.xlane.f32.xlu0 %v1784
    %v1786 = vpop.xlane.xlu0 %1785
    %v1787 = vsel %vm211, %v1781, -inf
    %1788 = vmax.xlane.f32.xlu0 %v1787
    %v1789 = vpop.xlane.xlu0 %1788
    %v1790 = vsub.f32 %v1776, %v1786
    %v1791 = vsub.f32 %v1781, %v1789
    %v1792 = vmul.f32 %v1790, 1.442695
    %v1793 = vpow.pop %v1792
    %v1794 = vmul.f32 %v1791, 1.442695
    %v1795 = vpow.pop %v1794
    %v1796 = vsel %vm211, %v1793, 0.0
    %1797 = vadd.xlane.f32.xlu0 %v1796
    %v1798 = vpop.xlane.xlu0 %1797
    %v1799 = vsel %vm211, %v1795, 0.0
    %1800 = vadd.xlane.f32.xlu0 %v1799
    %v1801 = vpop.xlane.xlu0 %1800
    %v1802 = vrcp.pop %v1798
    %v1803 = vrcp.pop %v1801
    %v1804 = vmul.f32 %v1793, %v1802
    %v1805 = vmul.f32 %v1795, %v1803
    %1806 = vrot.lane.b32.xlu0 %v1287, 48
    %v1807 = vpop.permute.xlu0 %1806
    %1808 = vrot.lane.b32.xlu0 %v1292, 48
    %v1809 = vpop.permute.xlu0 %1808
    %v1813 = vsel %vm211, %v1804, 0
    %v1816 = vsel %vm211, %v1805, 0
    %1818 = vmatprep.subr.mxu0 0.0
    %1819 = vmatpush1.msra.mxu0 %v1807
    %1820 = vmatprep.subr.mxu0 0.0
    %1821 = vmatpush1.msra.mxu0 %v1809
    %1822 = vmatprep.subr.mxu0 0.0
    %1823 = vmatpush1.msra.mxu0 0.0
    %1824 = vmatprep.subr.mxu0 0.0
    %1825 = vmatpush1.msra.mxu0 0.0
    %1826 = vmatprep.subr.mxu0 0.0
    %1827 = vmatpush1.msra.mxu0 0.0
    %1828 = vmatprep.subr.mxu0 0.0
    %1829 = vmatpush1.msra.mxu0 0.0
    %1830 = vmatprep.subr.mxu0 0.0
    %1831 = vmatpush1.msra.mxu0 0.0
    %1832 = vmatprep.subr.mxu0 0.0
    %1833 = vmatpush1.msra.mxu0 0.0
    %1834 = vmatprep.subr.mxu0 0.0
    %1835 = vmatpush1.msra.mxu0 0.0
    %1836 = vmatprep.subr.mxu0 0.0
    %1837 = vmatpush1.msra.mxu0 0.0
    %1838 = vmatprep.subr.mxu0 0.0
    %1839 = vmatpush1.msra.mxu0 0.0
    %1840 = vmatprep.subr.mxu0 0.0
    %1841 = vmatpush1.msra.mxu0 0.0
    %1842 = vmatprep.subr.mxu0 0.0
    %1843 = vmatpush1.msra.mxu0 0.0
    %1844 = vmatprep.subr.mxu0 0.0
    %1845 = vmatpush1.msra.mxu0 0.0
    %1846 = vmatprep.subr.mxu0 0.0
    %1847 = vmatpush1.msra.mxu0 0.0
    %1848 = vmatprep.subr.mxu0 0.0
    %1849 = vmatpush1.msra.mxu0 0.0
    %1850 = vmatprep.subr.mxu0 0.0
    %1851 = vmatpush1.msra.mxu0 0.0
    %1852 = vmatprep.subr.mxu0 0.0
    %1853 = vmatpush1.msra.mxu0 0.0
    %1854 = vmatprep.subr.mxu0 0.0
    %1855 = vmatpush1.msra.mxu0 0.0
    %1856 = vmatprep.subr.mxu0 0.0
    %1857 = vmatpush1.msra.mxu0 0.0
    %1858 = vmatprep.subr.mxu0 0.0
    %1859 = vmatpush1.msra.mxu0 0.0
    %1860 = vmatprep.subr.mxu0 0.0
    %1861 = vmatpush1.msra.mxu0 0.0
    %1862 = vmatprep.subr.mxu0 0.0
    %1863 = vmatpush1.msra.mxu0 0.0
    %1864 = vmatprep.subr.mxu0 0.0
    %1865 = vmatpush1.msra.mxu0 0.0
    %1866 = vmatprep.subr.mxu0 0.0
    %1867 = vmatpush1.msra.mxu0 0.0
    %1868 = vmatprep.subr.mxu0 0.0
    %1869 = vmatpush1.msra.mxu0 0.0
    %1870 = vmatprep.subr.mxu0 0.0
    %1871 = vmatpush1.msra.mxu0 0.0
    %1872 = vmatprep.subr.mxu0 0.0
    %1873 = vmatpush1.msra.mxu0 0.0
    %1874 = vmatprep.subr.mxu0 0.0
    %1875 = vmatpush1.msra.mxu0 0.0
    %1876 = vmatprep.subr.mxu0 0.0
    %1877 = vmatpush1.msra.mxu0 0.0
    %1878 = vmatprep.subr.mxu0 0.0
    %1879 = vmatpush1.msra.mxu0 0.0
    %1880 = vmatprep.subr.mxu0 0.0
    %1881 = vmatpush1.msra.mxu0 0.0
    %1882 = vmatprep.mubr.f32.mxu0 0.0
    %1883 = vmatmul.mubr.f32.gmra.mrb[0].mxu0 %v1813
    %v1884 = vpop.f32.mrb[0].mxu0
    %v1885 = vadd.f32 0.0, %v1884
    %v1886 = vpop.f32.mrb[0].mxu0
    %1887 = vmatprep.mubr.f32.mxu0 0.0
    %1888 = vmatmul.mubr.f32.gmra.mrb[0].mxu0 %v1816
    %v1889 = vpop.f32.mrb[0].mxu0
    %v1890 = vadd.f32 0.0, %v1889
    %v1891 = vpop.f32.mrb[0].mxu0
    %1892 = vdwg.mxu0
    %1893 = vrot.lane.b32.xlu0 %v1287, 104
    %v1894 = vpop.permute.xlu0 %1893
    %1895 = vrot.lane.b32.xlu0 %v1292, 104
    %v1896 = vpop.permute.xlu0 %1895
    %1897 = vrot.lane.b32.xlu0 %v1287, 72
    %v1898 = vpop.permute.xlu0 %1897
    %1899 = vrot.lane.b32.xlu0 %v1292, 72
    %v1900 = vpop.permute.xlu0 %1899
    %v1901 = vsel %vm127, %v1894, 0
    %v1903 = vsel %vm127, %v1896, 0
    %v1905 = vsel %vm127, %v1898, 0
    %v1907 = vsel %vm127, %v1900, 0
    %1909 = vmatprep.subr.mxu0 0.0
    %1910 = vmatpush1.xpose.msra.mxu0 %v1905
    %1911 = vmatprep.subr.mxu0 0.0
    %1912 = vmatpush1.xpose.msra.mxu0 %v1907
    %1913 = vmatprep.subr.mxu0 0.0
    %1914 = vmatpush1.xpose.msra.mxu0 0.0
    %1915 = vmatprep.subr.mxu0 0.0
    %1916 = vmatpush1.xpose.msra.mxu0 0.0
    %1917 = vmatprep.subr.mxu0 0.0
    %1918 = vmatpush1.xpose.msra.mxu0 0.0
    %1919 = vmatprep.subr.mxu0 0.0
    %1920 = vmatpush1.xpose.msra.mxu0 0.0
    %1921 = vmatprep.subr.mxu0 0.0
    %1922 = vmatpush1.xpose.msra.mxu0 0.0
    %1923 = vmatprep.subr.mxu0 0.0
    %1924 = vmatpush1.xpose.msra.mxu0 0.0
    %1925 = vmatprep.subr.mxu0 0.0
    %1926 = vmatpush1.xpose.msra.mxu0 0.0
    %1927 = vmatprep.subr.mxu0 0.0
    %1928 = vmatpush1.xpose.msra.mxu0 0.0
    %1929 = vmatprep.subr.mxu0 0.0
    %1930 = vmatpush1.xpose.msra.mxu0 0.0
    %1931 = vmatprep.subr.mxu0 0.0
    %1932 = vmatpush1.xpose.msra.mxu0 0.0
    %1933 = vmatprep.subr.mxu0 0.0
    %1934 = vmatpush1.xpose.msra.mxu0 0.0
    %1935 = vmatprep.subr.mxu0 0.0
    %1936 = vmatpush1.xpose.msra.mxu0 0.0
    %1937 = vmatprep.subr.mxu0 0.0
    %1938 = vmatpush1.xpose.msra.mxu0 0.0
    %1939 = vmatprep.subr.mxu0 0.0
    %1940 = vmatpush1.xpose.msra.mxu0 0.0
    %1941 = vmatprep.subr.mxu0 0.0
    %1942 = vmatpush1.xpose.msra.mxu0 0.0
    %1943 = vmatprep.subr.mxu0 0.0
    %1944 = vmatpush1.xpose.msra.mxu0 0.0
    %1945 = vmatprep.subr.mxu0 0.0
    %1946 = vmatpush1.xpose.msra.mxu0 0.0
    %1947 = vmatprep.subr.mxu0 0.0
    %1948 = vmatpush1.xpose.msra.mxu0 0.0
    %1949 = vmatprep.subr.mxu0 0.0
    %1950 = vmatpush1.xpose.msra.mxu0 0.0
    %1951 = vmatprep.subr.mxu0 0.0
    %1952 = vmatpush1.xpose.msra.mxu0 0.0
    %1953 = vmatprep.subr.mxu0 0.0
    %1954 = vmatpush1.xpose.msra.mxu0 0.0
    %1955 = vmatprep.subr.mxu0 0.0
    %1956 = vmatpush1.xpose.msra.mxu0 0.0
    %1957 = vmatprep.subr.mxu0 0.0
    %1958 = vmatpush1.xpose.msra.mxu0 0.0
    %1959 = vmatprep.subr.mxu0 0.0
    %1960 = vmatpush1.xpose.msra.mxu0 0.0
    %1961 = vmatprep.subr.mxu0 0.0
    %1962 = vmatpush1.xpose.msra.mxu0 0.0
    %1963 = vmatprep.subr.mxu0 0.0
    %1964 = vmatpush1.xpose.msra.mxu0 0.0
    %1965 = vmatprep.subr.mxu0 0.0
    %1966 = vmatpush1.xpose.msra.mxu0 0.0
    %1967 = vmatprep.subr.mxu0 0.0
    %1968 = vmatpush1.xpose.msra.mxu0 0.0
    %1969 = vmatprep.subr.mxu0 0.0
    %1970 = vmatpush1.xpose.msra.mxu0 0.0
    %1971 = vmatprep.subr.mxu0 0.0
    %1972 = vmatpush1.xpose.msra.mxu0 0.0
    %1973 = vmatprep.mubr.f32.mxu0 0.0
    %1974 = vmatmul.mubr.f32.gmra.mrb[0].mxu0 %v1901
    %v1975 = vpop.f32.mrb[0].mxu0
    %v1976 = vadd.f32 0.0, %v1975
    %v1977 = vpop.f32.mrb[0].mxu0
    %1978 = vmatprep.mubr.f32.mxu0 0.0
    %1979 = vmatmul.mubr.f32.gmra.mrb[0].mxu0 %v1903
    %v1980 = vpop.f32.mrb[0].mxu0
    %v1981 = vadd.f32 0.0, %v1980
    %v1982 = vpop.f32.mrb[0].mxu0
    %1983 = vdwg.mxu0
    %v1984 = vsel %vm211, %v1976, -inf
    %1985 = vmax.xlane.f32.xlu0 %v1984
    %v1986 = vpop.xlane.xlu0 %1985
    %v1987 = vsel %vm211, %v1981, -inf
    %1988 = vmax.xlane.f32.xlu0 %v1987
    %v1989 = vpop.xlane.xlu0 %1988
    %v1990 = vsub.f32 %v1976, %v1986
    %v1991 = vsub.f32 %v1981, %v1989
    %v1992 = vmul.f32 %v1990, 1.442695
    %v1993 = vpow.pop %v1992
    %v1994 = vmul.f32 %v1991, 1.442695
    %v1995 = vpow.pop %v1994
    %v1996 = vsel %vm211, %v1993, 0.0
    %1997 = vadd.xlane.f32.xlu0 %v1996
    %v1998 = vpop.xlane.xlu0 %1997
    %v1999 = vsel %vm211, %v1995, 0.0
    %2000 = vadd.xlane.f32.xlu0 %v1999
    %v2001 = vpop.xlane.xlu0 %2000
    %v2002 = vrcp.pop %v1998
    %v2003 = vrcp.pop %v2001
    %v2004 = vmul.f32 %v1993, %v2002
    %v2005 = vmul.f32 %v1995, %v2003
    %2006 = vrot.lane.b32.xlu0 %v1287, 40
    %v2007 = vpop.permute.xlu0 %2006
    %2008 = vrot.lane.b32.xlu0 %v1292, 40
    %v2009 = vpop.permute.xlu0 %2008
    %v2013 = vsel %vm211, %v2004, 0
    %v2016 = vsel %vm211, %v2005, 0
    %2018 = vmatprep.subr.mxu0 0.0
    %2019 = vmatpush1.msra.mxu0 %v2007
    %2020 = vmatprep.subr.mxu0 0.0
    %2021 = vmatpush1.msra.mxu0 %v2009
    %2022 = vmatprep.subr.mxu0 0.0
    %2023 = vmatpush1.msra.mxu0 0.0
    %2024 = vmatprep.subr.mxu0 0.0
    %2025 = vmatpush1.msra.mxu0 0.0
    %2026 = vmatprep.subr.mxu0 0.0
    %2027 = vmatpush1.msra.mxu0 0.0
    %2028 = vmatprep.subr.mxu0 0.0
    %2029 = vmatpush1.msra.mxu0 0.0
    %2030 = vmatprep.subr.mxu0 0.0
    %2031 = vmatpush1.msra.mxu0 0.0
    %2032 = vmatprep.subr.mxu0 0.0
    %2033 = vmatpush1.msra.mxu0 0.0
    %2034 = vmatprep.subr.mxu0 0.0
    %2035 = vmatpush1.msra.mxu0 0.0
    %2036 = vmatprep.subr.mxu0 0.0
    %2037 = vmatpush1.msra.mxu0 0.0
    %2038 = vmatprep.subr.mxu0 0.0
    %2039 = vmatpush1.msra.mxu0 0.0
    %2040 = vmatprep.subr.mxu0 0.0
    %2041 = vmatpush1.msra.mxu0 0.0
    %2042 = vmatprep.subr.mxu0 0.0
    %2043 = vmatpush1.msra.mxu0 0.0
    %2044 = vmatprep.subr.mxu0 0.0
    %2045 = vmatpush1.msra.mxu0 0.0
    %2046 = vmatprep.subr.mxu0 0.0
    %2047 = vmatpush1.msra.mxu0 0.0
    %2048 = vmatprep.subr.mxu0 0.0
    %2049 = vmatpush1.msra.mxu0 0.0
    %2050 = vmatprep.subr.mxu0 0.0
    %2051 = vmatpush1.msra.mxu0 0.0
    %2052 = vmatprep.subr.mxu0 0.0
    %2053 = vmatpush1.msra.mxu0 0.0
    %2054 = vmatprep.subr.mxu0 0.0
    %2055 = vmatpush1.msra.mxu0 0.0
    %2056 = vmatprep.subr.mxu0 0.0
    %2057 = vmatpush1.msra.mxu0 0.0
    %2058 = vmatprep.subr.mxu0 0.0
    %2059 = vmatpush1.msra.mxu0 0.0
    %2060 = vmatprep.subr.mxu0 0.0
    %2061 = vmatpush1.msra.mxu0 0.0
    %2062 = vmatprep.subr.mxu0 0.0
    %2063 = vmatpush1.msra.mxu0 0.0
    %2064 = vmatprep.subr.mxu0 0.0
    %2065 = vmatpush1.msra.mxu0 0.0
    %2066 = vmatprep.subr.mxu0 0.0
    %2067 = vmatpush1.msra.mxu0 0.0
    %2068 = vmatprep.subr.mxu0 0.0
    %2069 = vmatpush1.msra.mxu0 0.0
    %2070 = vmatprep.subr.mxu0 0.0
    %2071 = vmatpush1.msra.mxu0 0.0
    %2072 = vmatprep.subr.mxu0 0.0
    %2073 = vmatpush1.msra.mxu0 0.0
    %2074 = vmatprep.subr.mxu0 0.0
    %2075 = vmatpush1.msra.mxu0 0.0
    %2076 = vmatprep.subr.mxu0 0.0
    %2077 = vmatpush1.msra.mxu0 0.0
    %2078 = vmatprep.subr.mxu0 0.0
    %2079 = vmatpush1.msra.mxu0 0.0
    %2080 = vmatprep.subr.mxu0 0.0
    %2081 = vmatpush1.msra.mxu0 0.0
    %2082 = vmatprep.mubr.f32.mxu0 0.0
    %2083 = vmatmul.mubr.f32.gmra.mrb[0].mxu0 %v2013
    %v2084 = vpop.f32.mrb[0].mxu0
    %v2085 = vadd.f32 0.0, %v2084
    %v2086 = vpop.f32.mrb[0].mxu0
    %2087 = vmatprep.mubr.f32.mxu0 0.0
    %2088 = vmatmul.mubr.f32.gmra.mrb[0].mxu0 %v2016
    %v2089 = vpop.f32.mrb[0].mxu0
    %v2090 = vadd.f32 0.0, %v2089
    %v2091 = vpop.f32.mrb[0].mxu0
    %2092 = vdwg.mxu0
    %2095 = vrot.lane.b32.xlu0 %v1685, 8
    %v2096 = vpop.permute.xlu0 %2095
    %2097 = vrot.lane.b32.xlu0 %v1690, 8
    %v2098 = vpop.permute.xlu0 %2097
    %2103 = vrot.lane.b32.xlu0 %v1885, 16
    %v2104 = vpop.permute.xlu0 %2103
    %2105 = vrot.lane.b32.xlu0 %v1890, 16
    %v2106 = vpop.permute.xlu0 %2105
    %2111 = vrot.lane.b32.xlu0 %v2085, 24
    %v2112 = vpop.permute.xlu0 %2111
    %2113 = vrot.lane.b32.xlu0 %v2090, 24
    %v2114 = vpop.permute.xlu0 %2113
    %v2117 = vsel %vm127, %v1485, %v2096
    %v2118 = vsel %vm127, %v1490, %v2098
    %v2119 = vsel %vm211, %v2117, %v2104
    %v2120 = vsel %vm211, %v2118, %v2106
    %v2121 = vsel %vm949, %v2119, %v2112
    %v2122 = vsel %vm949, %v2120, %v2114
    %v2123 = vmul.f32 %v2121, %v27
    %v2124 = vmul.f32 %v2122, %v28
    %s2125 = scalar_lea.vmem %s3, 32
    %v2126 = vld [vmem:[%s2125] sm:$0xff]
    %v2127 = vld [vmem:[%s2125 + $0x8] sm:$0xff]
    %v2128 = vld [vmem:[%s2125 + $0x10] sm:$0xff]
    %v2129 = vld [vmem:[%s2125 + $0x18] sm:$0xff]
    %2132 = vrot.lane.b32.xlu0 %v1213, 32
    %v2133 = vpop.permute.xlu0 %2132
    %2134 = vrot.lane.b32.xlu0 %v1214, 32
    %v2135 = vpop.permute.xlu0 %2134
    %v2139 = vsel %vm39, %v2123, 0
    %v2142 = vsel %vm39, %v2124, 0
    %2144 = vmatprep.subr.mxu0 0.0
    %2145 = vmatpush1.msra.mxu0 %v2126
    %2146 = vmatprep.subr.mxu0 0.0
    %2147 = vmatpush1.msra.mxu0 %v2127
    %2148 = vmatprep.subr.mxu0 0.0
    %2149 = vmatpush1.msra.mxu0 %v2128
    %2150 = vmatprep.subr.mxu0 0.0
    %2151 = vmatpush1.msra.mxu0 %v2129
    %2152 = vmatprep.subr.mxu0 0.0
    %2153 = vmatpush1.msra.mxu0 0.0
    %2154 = vmatprep.subr.mxu0 0.0
    %2155 = vmatpush1.msra.mxu0 0.0
    %2156 = vmatprep.subr.mxu0 0.0
    %2157 = vmatpush1.msra.mxu0 0.0
    %2158 = vmatprep.subr.mxu0 0.0
    %2159 = vmatpush1.msra.mxu0 0.0
    %2160 = vmatprep.subr.mxu0 0.0
    %2161 = vmatpush1.msra.mxu0 0.0
    %2162 = vmatprep.subr.mxu0 0.0
    %2163 = vmatpush1.msra.mxu0 0.0
    %2164 = vmatprep.subr.mxu0 0.0
    %2165 = vmatpush1.msra.mxu0 0.0
    %2166 = vmatprep.subr.mxu0 0.0
    %2167 = vmatpush1.msra.mxu0 0.0
    %2168 = vmatprep.subr.mxu0 0.0
    %2169 = vmatpush1.msra.mxu0 0.0
    %2170 = vmatprep.subr.mxu0 0.0
    %2171 = vmatpush1.msra.mxu0 0.0
    %2172 = vmatprep.subr.mxu0 0.0
    %2173 = vmatpush1.msra.mxu0 0.0
    %2174 = vmatprep.subr.mxu0 0.0
    %2175 = vmatpush1.msra.mxu0 0.0
    %2176 = vmatprep.subr.mxu0 0.0
    %2177 = vmatpush1.msra.mxu0 0.0
    %2178 = vmatprep.subr.mxu0 0.0
    %2179 = vmatpush1.msra.mxu0 0.0
    %2180 = vmatprep.subr.mxu0 0.0
    %2181 = vmatpush1.msra.mxu0 0.0
    %2182 = vmatprep.subr.mxu0 0.0
    %2183 = vmatpush1.msra.mxu0 0.0
    %2184 = vmatprep.subr.mxu0 0.0
    %2185 = vmatpush1.msra.mxu0 0.0
    %2186 = vmatprep.subr.mxu0 0.0
    %2187 = vmatpush1.msra.mxu0 0.0
    %2188 = vmatprep.subr.mxu0 0.0
    %2189 = vmatpush1.msra.mxu0 0.0
    %2190 = vmatprep.subr.mxu0 0.0
    %2191 = vmatpush1.msra.mxu0 0.0
    %2192 = vmatprep.subr.mxu0 0.0
    %2193 = vmatpush1.msra.mxu0 0.0
    %2194 = vmatprep.subr.mxu0 0.0
    %2195 = vmatpush1.msra.mxu0 0.0
    %2196 = vmatprep.subr.mxu0 0.0
    %2197 = vmatpush1.msra.mxu0 0.0
    %2198 = vmatprep.subr.mxu0 0.0
    %2199 = vmatpush1.msra.mxu0 0.0
    %2200 = vmatprep.subr.mxu0 0.0
    %2201 = vmatpush1.msra.mxu0 0.0
    %2202 = vmatprep.subr.mxu0 0.0
    %2203 = vmatpush1.msra.mxu0 0.0
    %2204 = vmatprep.subr.mxu0 0.0
    %2205 = vmatpush1.msra.mxu0 0.0
    %2206 = vmatprep.subr.mxu0 0.0
    %2207 = vmatpush1.msra.mxu0 0.0
    %2208 = vmatprep.mubr.f32.mxu0 0.0
    %2209 = vmatmul.mubr.f32.gmra.mrb[0].mxu0 %v2139
    %v2210 = vpop.f32.mrb[0].mxu0
    %v2211 = vadd.f32 %v2133, %v2210
    %v2212 = vpop.f32.mrb[0].mxu0
    %2213 = vmatprep.mubr.f32.mxu0 0.0
    %2214 = vmatmul.mubr.f32.gmra.mrb[0].mxu0 %v2142
    %v2215 = vpop.f32.mrb[0].mxu0
    %v2216 = vadd.f32 %v2135, %v2215
    %v2217 = vpop.f32.mrb[0].mxu0
    %2218 = vdwg.mxu0
    %v2219 = vadd.f32 %v2211, %v1049
    %v2220 = vadd.f32 %v2216, %v1050
    %v2221 = vmax.f32 %v2219, 0.0
    %v2222 = vmax.f32 %v2220, 0.0
    %s2223 = scalar_lea.vmem %s4, 64
    %v2224 = vld [vmem:[%s2223] sm:$0xff]
    %v2225 = vld [vmem:[%s2223 + $0x8] sm:$0xff]
    %v2226 = vld [vmem:[%s2223 + $0x10] sm:$0xff]
    %v2227 = vld [vmem:[%s2223 + $0x18] sm:$0xff]
    %v2229 = vsel %vm39, %v2221, 0
    %v2232 = vsel %vm39, %v2222, 0
    %2234 = vmatprep.subr.mxu0 0.0
    %2235 = vmatpush1.msra.mxu0 %v2224
    %2236 = vmatprep.subr.mxu0 0.0
    %2237 = vmatpush1.msra.mxu0 %v2225
    %2238 = vmatprep.subr.mxu0 0.0
    %2239 = vmatpush1.msra.mxu0 %v2226
    %2240 = vmatprep.subr.mxu0 0.0
    %2241 = vmatpush1.msra.mxu0 %v2227
    %2242 = vmatprep.subr.mxu0 0.0
    %2243 = vmatpush1.msra.mxu0 0.0
    %2244 = vmatprep.subr.mxu0 0.0
    %2245 = vmatpush1.msra.mxu0 0.0
    %2246 = vmatprep.subr.mxu0 0.0
    %2247 = vmatpush1.msra.mxu0 0.0
    %2248 = vmatprep.subr.mxu0 0.0
    %2249 = vmatpush1.msra.mxu0 0.0
    %2250 = vmatprep.subr.mxu0 0.0
    %2251 = vmatpush1.msra.mxu0 0.0
    %2252 = vmatprep.subr.mxu0 0.0
    %2253 = vmatpush1.msra.mxu0 0.0
    %2254 = vmatprep.subr.mxu0 0.0
    %2255 = vmatpush1.msra.mxu0 0.0
    %2256 = vmatprep.subr.mxu0 0.0
    %2257 = vmatpush1.msra.mxu0 0.0
    %2258 = vmatprep.subr.mxu0 0.0
    %2259 = vmatpush1.msra.mxu0 0.0
    %2260 = vmatprep.subr.mxu0 0.0
    %2261 = vmatpush1.msra.mxu0 0.0
    %2262 = vmatprep.subr.mxu0 0.0
    %2263 = vmatpush1.msra.mxu0 0.0
    %2264 = vmatprep.subr.mxu0 0.0
    %2265 = vmatpush1.msra.mxu0 0.0
    %2266 = vmatprep.subr.mxu0 0.0
    %2267 = vmatpush1.msra.mxu0 0.0
    %2268 = vmatprep.subr.mxu0 0.0
    %2269 = vmatpush1.msra.mxu0 0.0
    %2270 = vmatprep.subr.mxu0 0.0
    %2271 = vmatpush1.msra.mxu0 0.0
    %2272 = vmatprep.subr.mxu0 0.0
    %2273 = vmatpush1.msra.mxu0 0.0
    %2274 = vmatprep.subr.mxu0 0.0
    %2275 = vmatpush1.msra.mxu0 0.0
    %2276 = vmatprep.subr.mxu0 0.0
    %2277 = vmatpush1.msra.mxu0 0.0
    %2278 = vmatprep.subr.mxu0 0.0
    %2279 = vmatpush1.msra.mxu0 0.0
    %2280 = vmatprep.subr.mxu0 0.0
    %2281 = vmatpush1.msra.mxu0 0.0
    %2282 = vmatprep.subr.mxu0 0.0
    %2283 = vmatpush1.msra.mxu0 0.0
    %2284 = vmatprep.subr.mxu0 0.0
    %2285 = vmatpush1.msra.mxu0 0.0
    %2286 = vmatprep.subr.mxu0 0.0
    %2287 = vmatpush1.msra.mxu0 0.0
    %2288 = vmatprep.subr.mxu0 0.0
    %2289 = vmatpush1.msra.mxu0 0.0
    %2290 = vmatprep.subr.mxu0 0.0
    %2291 = vmatpush1.msra.mxu0 0.0
    %2292 = vmatprep.subr.mxu0 0.0
    %2293 = vmatpush1.msra.mxu0 0.0
    %2294 = vmatprep.subr.mxu0 0.0
    %2295 = vmatpush1.msra.mxu0 0.0
    %2296 = vmatprep.subr.mxu0 0.0
    %2297 = vmatpush1.msra.mxu0 0.0
    %2298 = vmatprep.mubr.f32.mxu0 0.0
    %2299 = vmatmul.mubr.f32.gmra.mrb[0].mxu0 %v2229
    %v2300 = vpop.f32.mrb[0].mxu0
    %v2301 = vadd.f32 0.0, %v2300
    %v2302 = vpop.f32.mrb[0].mxu0
    %2303 = vmatprep.mubr.f32.mxu0 0.0
    %2304 = vmatmul.mubr.f32.gmra.mrb[0].mxu0 %v2232
    %v2305 = vpop.f32.mrb[0].mxu0
    %v2306 = vadd.f32 0.0, %v2305
    %v2307 = vpop.f32.mrb[0].mxu0
    %2308 = vdwg.mxu0
    %v2309 = vadd.f32 %v1204, %v2301
    %v2310 = vadd.f32 %v1209, %v2306
    %v2311 = vld [vmem:[%s5] sm:$0x1]
    %v2313 = vlaneseq
    %v2314 = vshrl.u32 %v2313, 7
    %v2315 = vsub.s32 0, %v2314
    %v2316 = vrot.slane %v2311, %v2315
    %v2318 = vadd.f32 %v2309, %v2316
    %v2319 = vadd.f32 %v2310, %v2316
    %v2320 = vmax.f32 %v2318, 0.0
    %v2321 = vmax.f32 %v2319, 0.0
    %2322 = vst [vmem:[#allocation2] sm:$0xff] %v2320
    %2323 = vst [vmem:[#allocation2 + $0x8] sm:$0xff] %v2321
    // Predicated region
    $region26: #{graph_transformer_forward.1} parent=1 // pred_check
      _
    $region27: #{graph_transformer_forward.1} parent=1 // pred_check_branch
      %2325 = sbr.rel (0) target = $region29
    $region28: #{graph_transformer_forward.1} parent=1 // pred_region
      %s2327 = ssub.s32 256, 256
      %2328 = vsyncadd [#allocation3], %s2327
      %s2329 = sshll.u32 [#allocation2], 4
      %s2330 = int_to_ptr.vmem [resolvable:$true] %s2329
      %2335 = dma.vmem_to_hbm [thread:$0]  %s2330, 256, %s6, [#allocation3], 128, 128, 8
    $region29: #{graph_transformer_forward.1} parent=1 // pred_fallthru
      _
    // Predicated region
    $region30: #{graph_transformer_forward.1} parent=1 // pred_check
      _
    $region31: #{graph_transformer_forward.1} parent=1 // pred_check_branch
      %2337 = sbr.rel (0) target = $region33
    $region32: #{graph_transformer_forward.1} parent=1 // pred_region
      %2338 = dma.done [#allocation3], 256
    $region33: #{graph_transformer_forward.1} parent=1 // pred_fallthru
      _
    %2339 = vsyncpa [#allocation3], 1

</llo_original>
